<compile_context>
chip_gen: v6e
topology: v6e:2x2x1
jax: 0.10.0
libtpu: 0.0.40
codegen_flags: <defaults>
</compile_context>

<pallas_src>
import functools

import jax
import jax.numpy as jnp
from jax.experimental import pallas as pl
from jax.experimental.pallas import tpu as pltpu


# ------------------------------ Pallas kernels ------------------------------

def _qkv_proj_kernel(xq_ref, xk_ref, xv_ref, wq_ref, wk_ref, wv_ref,
                     q_ref, k_ref, v_ref):
    """Fused Q/K/V projections for one batch element.

    All operands are bf16 (cast in the wrapper -> half the HBM/DMA bytes),
    accumulation is f32 on the MXU.  Wq is pre-scaled by head_dim_kq**-0.5 in
    the wrapper, so the attention scale disappears from the kernels.  The
    module defaults q_bias=k_bias=v_bias=False, so there are no bias refs (no
    pointless zero DMAs / adds).
    """
    q_ref[0] = jnp.dot(xq_ref[0], wq_ref[...],
                       preferred_element_type=jnp.float32).astype(q_ref.dtype)
    k_ref[0] = jnp.dot(xk_ref[0], wk_ref[...],
                       preferred_element_type=jnp.float32).astype(k_ref.dtype)
    v_ref[0] = jnp.dot(xv_ref[0], wv_ref[...],
                       preferred_element_type=jnp.float32).astype(v_ref.dtype)


def _attn_proj_kernel(q_ref, k_ref, v_ref, wp_ref, bp_ref, o_ref):
    """Fused attention core + head-merge + output projection, one batch element.

    q/k/v refs are (1, H, L, hd) in the module's `.view(B, H, L, hd)` layout
    (already scaled, bf16).  Softmax stays in f32; the divide uses the EUP
    approximate reciprocal (frees VALU slots).  The merge-heads transpose +
    reshape of the PyTorch module is folded into the projection by
    accumulating per-head (Lq, hd_v) @ Wp[h*hd_v:(h+1)*hd_v, :] products, so
    no XLA transpose / activation HBM round-trip is needed before the proj.
    """
    q = q_ref[0]                                     # (H, Lq, hd_kq) bf16
    k = k_ref[0]                                     # (H, Lk, hd_kq) bf16
    v = v_ref[0]                                     # (H, Lv, hd_v)  bf16
    num_heads, len_q, _ = q.shape
    hd_v = v.shape[-1]
    dim_v = wp_ref.shape[1]

    # scores + softmax (f32)
    s = jnp.einsum("hqd,hkd->hqk", q, k, preferred_element_type=jnp.float32)
    s = s - jnp.max(s, axis=-1, keepdims=True)
    p = jnp.exp(s)
    p = p * pl.reciprocal(jnp.sum(p, axis=-1, keepdims=True), approx=True)

    # attention output per head (f32 accumulate on the MXU)
    o = jnp.einsum("hqk,hkd->hqd", p.astype(v.dtype), v,
                   preferred_element_type=jnp.float32)        # (H, Lq, hd_v)

    # output projection with the head-merge folded in:
    #   concat_h(o_h) @ Wp + b  ==  sum_h  o_h @ Wp[h*hd_v:(h+1)*hd_v, :]  + b
    acc = jnp.zeros((len_q, dim_v), jnp.float32)
    for h in range(num_heads):                        # static unroll, H small
        acc = acc + jnp.dot(o[h].astype(v.dtype),
                            wp_ref[h * hd_v:(h + 1) * hd_v, :],
                            preferred_element_type=jnp.float32)
    o_ref[0] = (acc + bp_ref[...]).astype(o_ref.dtype)


# ------------------------------ Pallas wrapper -------------------------------

def attention_pallas(x_q, x_k, x_v, params, num_heads):
    """Forward pass of the PyTorch `Attention` module (eval semantics)."""
    wq, wk, wv = params["wq"], params["wk"], params["wv"]
    wp, bp = params["wp"], params["bp"]

    B, Lq, Dkq = x_q.shape
    Lk = x_k.shape[1]
    Lv, Dv = x_v.shape[1], x_v.shape[2]
    assert Dkq % num_heads == 0 and Dv % num_heads == 0
    hd_kq = Dkq // num_heads
    hd_v = Dv // num_heads
    scale = hd_kq ** -0.5

    bf16 = jnp.bfloat16
    # bf16 MXU operands (halves DMA bytes, 2x MXU rate on v6e/v7x); softmax,
    # LN-free epilogues and accumulators stay f32.
    xq_b, xk_b, xv_b = x_q.astype(bf16), x_k.astype(bf16), x_v.astype(bf16)
    wq_b = (wq * scale).astype(bf16)        # fold attention scale into Wq
    wk_b, wv_b, wp_b = wk.astype(bf16), wv.astype(bf16), wp.astype(bf16)
    bp_2d = bp.reshape(1, Dv).astype(jnp.float32)

    cparams = pltpu.CompilerParams(
        dimension_semantics=("parallel",),            # shard batch on v7x 2 TCs
        vmem_limit_bytes=32 * 1024 * 1024)            # explicit, v7x-safe

    # ---- kernel 1: fused Q/K/V projections, grid over batch ----
    qkv_cost = pl.CostEstimate(
        flops=2 * B * (Lq * Dkq * Dkq + Lk * Dkq * Dkq + Lv * Dv * Dv),
        transcendentals=0,
        bytes_accessed=2 * (2 * B * (Lq * Dkq + Lk * Dkq + Lv * Dv)
                            + 2 * Dkq * Dkq + Dv * Dv))
    q, k, v = pl.pallas_call(
        _qkv_proj_kernel,
        grid=(B,),
        in_specs=[
            pl.BlockSpec((1, Lq, Dkq), lambda b: (b, 0, 0)),
            pl.BlockSpec((1, Lk, Dkq), lambda b: (b, 0, 0)),
            pl.BlockSpec((1, Lv, Dv), lambda b: (b, 0, 0)),
            pl.BlockSpec((Dkq, Dkq), lambda b: (0, 0)),   # weights stay resident
            pl.BlockSpec((Dkq, Dkq), lambda b: (0, 0)),
            pl.BlockSpec((Dv, Dv), lambda b: (0, 0)),
        ],
        out_specs=[
            pl.BlockSpec((1, Lq, Dkq), lambda b: (b, 0, 0)),
            pl.BlockSpec((1, Lk, Dkq), lambda b: (b, 0, 0)),
            pl.BlockSpec((1, Lv, Dv), lambda b: (b, 0, 0)),
        ],
        out_shape=[
            jax.ShapeDtypeStruct((B, Lq, Dkq), bf16),
            jax.ShapeDtypeStruct((B, Lk, Dkq), bf16),
            jax.ShapeDtypeStruct((B, Lv, Dv), bf16),
        ],
        compiler_params=cparams,
        cost_estimate=qkv_cost,
    )(xq_b, xk_b, xv_b, wq_b, wk_b, wv_b)

    # PyTorch's `.view(B, H, L, hd)`: a row-major reshape, NOT the standard
    # split-heads + transpose.  Kept in XLA (layout-only, tiny); a naive
    # split-heads index_map would silently change the math.
    q = q.reshape(B, num_heads, Lq, hd_kq)
    k = k.reshape(B, num_heads, Lk, hd_kq)
    v = v.reshape(B, num_heads, Lv, hd_v)

    # ---- kernel 2: attention + head-merge + output projection ----
    attn_cost = pl.CostEstimate(
        flops=2 * B * num_heads * Lq * Lk * (hd_kq + hd_v)
              + 2 * B * num_heads * Lq * hd_v * Dv,
        transcendentals=B * num_heads * Lq * Lk,
        bytes_accessed=2 * B * num_heads * (Lq * hd_kq + Lk * hd_kq + Lv * hd_v)
                       + 2 * Dv * Dv + 4 * Dv + 4 * B * Lq * Dv)
    out = pl.pallas_call(
        _attn_proj_kernel,
        grid=(B,),
        in_specs=[
            pl.BlockSpec((1, num_heads, Lq, hd_kq), lambda b: (b, 0, 0, 0)),
            pl.BlockSpec((1, num_heads, Lk, hd_kq), lambda b: (b, 0, 0, 0)),
            pl.BlockSpec((1, num_heads, Lv, hd_v), lambda b: (b, 0, 0, 0)),
            pl.BlockSpec((Dv, Dv), lambda b: (0, 0)),
            pl.BlockSpec((1, Dv), lambda b: (0, 0)),
        ],
        out_specs=pl.BlockSpec((1, Lq, Dv), lambda b: (b, 0, 0)),
        out_shape=jax.ShapeDtypeStruct((B, Lq, Dv), jnp.float32),
        compiler_params=cparams,
        cost_estimate=attn_cost,
    )(q, k, v, wp_b, bp_2d)
    return out


# --------------------- pure-JAX references (validation) ----------------------

def attention_ref(x_q, x_k, x_v, params, num_heads, *, bf16_match=False):
    """Reference of the PyTorch forward.  bf16_match=True mirrors the kernels'
    bf16 MXU operands / f32 accumulation for a tight comparison; False is the
    full-f32 PyTorch-semantics reference (loose tolerance vs bf16 kernels)."""
    wq, wk, wv = params["wq"], params["wk"], params["wv"]
    wp, bp = params["wp"], params["bp"]
    B, Lq, Dkq = x_q.shape
    Lk = x_k.shape[1]
    Lv, Dv = x_v.shape[1], x_v.shape[2]
    hd_kq = Dkq // num_heads
    hd_v = Dv // num_heads
    scale = hd_kq ** -0.5

    mm_dtype = jnp.bfloat16 if bf16_match else jnp.float32
    prec = None if bf16_match else jax.lax.Precision.HIGHEST

    def mm(a, b):
        return jnp.dot(a.astype(mm_dtype), b.astype(mm_dtype),
                       preferred_element_type=jnp.float32, precision=prec)

    q = mm(x_q, wq * scale).astype(mm_dtype)
    k = mm(x_k, wk).astype(mm_dtype)
    v = mm(x_v, wv).astype(mm_dtype)
    # PyTorch `.view(B, H, L, hd)` — plain row-major reshape.
    q = q.reshape(B, num_heads, Lq, hd_kq)
    k = k.reshape(B, num_heads, Lk, hd_kq)
    v = v.reshape(B, num_heads, Lv, hd_v)

    s = jnp.einsum("bhqd,bhkd->bhqk", q, k,
                   preferred_element_type=jnp.float32, precision=prec)
    s = s - jnp.max(s, axis=-1, keepdims=True)
    p = jnp.exp(s)
    p = p / jnp.sum(p, axis=-1, keepdims=True)
    o = jnp.einsum("bhqk,bhkd->bhqd", p.astype(mm_dtype), v,
                   preferred_element_type=jnp.float32, precision=prec)
    o = jnp.transpose(o, (0, 2, 1, 3)).reshape(B, Lq, Dv)   # merge heads
    return mm(o, wp) + bp


# ----------------------------------- main ------------------------------------

if __name__ == "__main__":
    # Small shapes consistent with the module (cross-attention capable):
    # dim_kq = dim_v = 128 (divisible by num_heads=8 -> head_dim 16).
    B, LEN_Q, LEN_KV = 2, 8, 16
    DIM_KQ, DIM_V, NUM_HEADS = 128, 128, 8

    key = jax.random.PRNGKey(0)
    k1, k2, k3, k4, k5, k6, k7, k8 = jax.random.split(key, 8)
    x_q = jax.random.normal(k1, (B, LEN_Q, DIM_KQ), jnp.float32)
    x_k = jax.random.normal(k2, (B, LEN_KV, DIM_KQ), jnp.float32)
    x_v = jax.random.normal(k3, (B, LEN_KV, DIM_V), jnp.float32)
    params = dict(
        # weights stored as (in, out) == torch weight.T
        wq=jax.random.normal(k4, (DIM_KQ, DIM_KQ), jnp.float32) * DIM_KQ ** -0.5,
        wk=jax.random.normal(k5, (DIM_KQ, DIM_KQ), jnp.float32) * DIM_KQ ** -0.5,
        wv=jax.random.normal(k6, (DIM_V, DIM_V), jnp.float32) * DIM_V ** -0.5,
        wp=jax.random.normal(k7, (DIM_V, DIM_V), jnp.float32) * DIM_V ** -0.5,
        bp=jax.random.normal(k8, (DIM_V,), jnp.float32) * 0.02,
    )

    fwd = jax.jit(functools.partial(attention_pallas, num_heads=NUM_HEADS))
    out = fwd(x_q, x_k, x_v, params)
    jax.block_until_ready(out)
    assert out.shape == (B, LEN_Q, DIM_V), out.shape

    # Tight check vs a reference doing the same bf16 matmul math.
    out_match = attention_ref(x_q, x_k, x_v, params, NUM_HEADS, bf16_match=True)
    err_match = float(jnp.max(jnp.abs(out - out_match)))
    assert jnp.allclose(out, out_match, atol=2e-2, rtol=2e-2), err_match

    # Semantic sanity check vs the full-f32 PyTorch-equivalent reference
    # (loose tolerance: expected bf16 quantization error only).
    out_f32 = attention_ref(x_q, x_k, x_v, params, NUM_HEADS, bf16_match=False)
    err_f32 = float(jnp.max(jnp.abs(out - out_f32)))
    assert jnp.allclose(out, out_f32, atol=8e-2, rtol=8e-2), err_f32

    print("KERNEL_OK")
</pallas_src>

<mosaic_0001>
module attributes {stable_mosaic.version = 11 : i64} {
  func.func @_qkv_proj_kernel(%arg0: i32, %arg1: memref<1x8x128xbf16, #tpu.memory_space<vmem>>, %arg2: memref<1x16x128xbf16, #tpu.memory_space<vmem>>, %arg3: memref<1x16x128xbf16, #tpu.memory_space<vmem>>, %arg4: memref<128x128xbf16, #tpu.memory_space<vmem>>, %arg5: memref<128x128xbf16, #tpu.memory_space<vmem>>, %arg6: memref<128x128xbf16, #tpu.memory_space<vmem>>, %arg7: memref<1x8x128xbf16, #tpu.memory_space<vmem>>, %arg8: memref<1x16x128xbf16, #tpu.memory_space<vmem>>, %arg9: memref<1x16x128xbf16, #tpu.memory_space<vmem>>) attributes {dimension_semantics = [#tpu.dimension_semantics<parallel>], iteration_bounds = array<i64: 2>, scalar_prefetch = 0 : i64, scratch_operands = 0 : i64, tpu.core_type = #tpu.core_type<tc>, window_params = [{transform_indices = @transform_0, window_bounds = array<i64: 1, 8, 128>}, {transform_indices = @transform_1, window_bounds = array<i64: 1, 16, 128>}, {transform_indices = @transform_2, window_bounds = array<i64: 1, 16, 128>}, {pipeline_mode = #tpu.pipeline_mode<synchronous>, transform_indices = @transform_3, window_bounds = array<i64: 128, 128>}, {pipeline_mode = #tpu.pipeline_mode<synchronous>, transform_indices = @transform_4, window_bounds = array<i64: 128, 128>}, {pipeline_mode = #tpu.pipeline_mode<synchronous>, transform_indices = @transform_5, window_bounds = array<i64: 128, 128>}, {transform_indices = @transform_6, window_bounds = array<i64: 1, 8, 128>}, {transform_indices = @transform_7, window_bounds = array<i64: 1, 16, 128>}, {transform_indices = @transform_8, window_bounds = array<i64: 1, 16, 128>}]} {
    %c0 = arith.constant 0 : index
    %c0_0 = arith.constant 0 : index
    %c0_1 = arith.constant 0 : index
    %0 = vector.load %arg1[%c0, %c0_0, %c0_1] : memref<1x8x128xbf16, #tpu.memory_space<vmem>>, vector<1x8x128xbf16>
    %1 = vector.shape_cast %0 : vector<1x8x128xbf16> to vector<8x128xbf16>
    %c0_2 = arith.constant 0 : index
    %c0_3 = arith.constant 0 : index
    %2 = vector.load %arg4[%c0_2, %c0_3] : memref<128x128xbf16, #tpu.memory_space<vmem>>, vector<128x128xbf16>
    %cst = arith.constant dense<0.000000e+00> : vector<8x128xf32>
    %3 = tpu.matmul %1, %2, %cst {dimension_numbers = #tpu.dot_dimension_numbers<[1], [0], [0], [1], [0, 0, 1, 1], [], []>} : vector<8x128xbf16>, vector<128x128xbf16>, vector<8x128xf32> -> vector<8x128xf32>
    %4 = arith.truncf %3 : vector<8x128xf32> to vector<8x128xbf16>
    %c0_4 = arith.constant 0 : index
    %c0_5 = arith.constant 0 : index
    %c0_6 = arith.constant 0 : index
    %5 = vector.load %arg7[%c0_4, %c0_5, %c0_6] : memref<1x8x128xbf16, #tpu.memory_space<vmem>>, vector<1x8x128xbf16>
    %6 = vector.shape_cast %5 : vector<1x8x128xbf16> to vector<8x128xbf16>
    %7 = vector.shape_cast %4 : vector<8x128xbf16> to vector<1x8x128xbf16>
    tpu.vector_store %arg7[%c0_4, %c0_5, %c0_6], %7 {strides = array<i32>} : memref<1x8x128xbf16, #tpu.memory_space<vmem>>, vector<1x8x128xbf16>,
    %c0_7 = arith.constant 0 : index
    %c0_8 = arith.constant 0 : index
    %c0_9 = arith.constant 0 : index
    %8 = vector.load %arg2[%c0_7, %c0_8, %c0_9] : memref<1x16x128xbf16, #tpu.memory_space<vmem>>, vector<1x16x128xbf16>
    %9 = vector.shape_cast %8 : vector<1x16x128xbf16> to vector<16x128xbf16>
    %c0_10 = arith.constant 0 : index
    %c0_11 = arith.constant 0 : index
    %10 = vector.load %arg5[%c0_10, %c0_11] : memref<128x128xbf16, #tpu.memory_space<vmem>>, vector<128x128xbf16>
    %cst_12 = arith.constant dense<0.000000e+00> : vector<16x128xf32>
    %11 = tpu.matmul %9, %10, %cst_12 {dimension_numbers = #tpu.dot_dimension_numbers<[1], [0], [0], [1], [0, 0, 1, 1], [], []>} : vector<16x128xbf16>, vector<128x128xbf16>, vector<16x128xf32> -> vector<16x128xf32>
    %12 = arith.truncf %11 : vector<16x128xf32> to vector<16x128xbf16>
    %c0_13 = arith.constant 0 : index
    %c0_14 = arith.constant 0 : index
    %c0_15 = arith.constant 0 : index
    %13 = vector.load %arg8[%c0_13, %c0_14, %c0_15] : memref<1x16x128xbf16, #tpu.memory_space<vmem>>, vector<1x16x128xbf16>
    %14 = vector.shape_cast %13 : vector<1x16x128xbf16> to vector<16x128xbf16>
    %15 = vector.shape_cast %12 : vector<16x128xbf16> to vector<1x16x128xbf16>
    tpu.vector_store %arg8[%c0_13, %c0_14, %c0_15], %15 {strides = array<i32>} : memref<1x16x128xbf16, #tpu.memory_space<vmem>>, vector<1x16x128xbf16>,
    %c0_16 = arith.constant 0 : index
    %c0_17 = arith.constant 0 : index
    %c0_18 = arith.constant 0 : index
    %16 = vector.load %arg3[%c0_16, %c0_17, %c0_18] : memref<1x16x128xbf16, #tpu.memory_space<vmem>>, vector<1x16x128xbf16>
    %17 = vector.shape_cast %16 : vector<1x16x128xbf16> to vector<16x128xbf16>
    %c0_19 = arith.constant 0 : index
    %c0_20 = arith.constant 0 : index
    %18 = vector.load %arg6[%c0_19, %c0_20] : memref<128x128xbf16, #tpu.memory_space<vmem>>, vector<128x128xbf16>
    %cst_21 = arith.constant dense<0.000000e+00> : vector<16x128xf32>
    %19 = tpu.matmul %17, %18, %cst_21 {dimension_numbers = #tpu.dot_dimension_numbers<[1], [0], [0], [1], [0, 0, 1, 1], [], []>} : vector<16x128xbf16>, vector<128x128xbf16>, vector<16x128xf32> -> vector<16x128xf32>
    %20 = arith.truncf %19 : vector<16x128xf32> to vector<16x128xbf16>
    %c0_22 = arith.constant 0 : index
    %c0_23 = arith.constant 0 : index
    %c0_24 = arith.constant 0 : index
    %21 = vector.load %arg9[%c0_22, %c0_23, %c0_24] : memref<1x16x128xbf16, #tpu.memory_space<vmem>>, vector<1x16x128xbf16>
    %22 = vector.shape_cast %21 : vector<1x16x128xbf16> to vector<16x128xbf16>
    %23 = vector.shape_cast %20 : vector<16x128xbf16> to vector<1x16x128xbf16>
    tpu.vector_store %arg9[%c0_22, %c0_23, %c0_24], %23 {strides = array<i32>} : memref<1x16x128xbf16, #tpu.memory_space<vmem>>, vector<1x16x128xbf16>,
    return
  }
  func.func @transform_0(%arg0: i32) -> (i32, i32, i32) {
    %c0_i32 = arith.constant 0 : i32
    %c0_i32_0 = arith.constant 0 : i32
    %c0_i32_1 = arith.constant 0 : i32
    return %arg0, %c0_i32, %c0_i32_0 : i32, i32, i32
  }
  func.func @transform_1(%arg0: i32) -> (i32, i32, i32) {
    %c0_i32 = arith.constant 0 : i32
    %c0_i32_0 = arith.constant 0 : i32
    %c0_i32_1 = arith.constant 0 : i32
    return %arg0, %c0_i32, %c0_i32_0 : i32, i32, i32
  }
  func.func @transform_2(%arg0: i32) -> (i32, i32, i32) {
    %c0_i32 = arith.constant 0 : i32
    %c0_i32_0 = arith.constant 0 : i32
    %c0_i32_1 = arith.constant 0 : i32
    return %arg0, %c0_i32, %c0_i32_0 : i32, i32, i32
  }
  func.func @transform_3(%arg0: i32) -> (i32, i32) {
    %c0_i32 = arith.constant 0 : i32
    %c0_i32_0 = arith.constant 0 : i32
    %c0_i32_1 = arith.constant 0 : i32
    return %c0_i32, %c0_i32_0 : i32, i32
  }
  func.func @transform_4(%arg0: i32) -> (i32, i32) {
    %c0_i32 = arith.constant 0 : i32
    %c0_i32_0 = arith.constant 0 : i32
    %c0_i32_1 = arith.constant 0 : i32
    return %c0_i32, %c0_i32_0 : i32, i32
  }
  func.func @transform_5(%arg0: i32) -> (i32, i32) {
    %c0_i32 = arith.constant 0 : i32
    %c0_i32_0 = arith.constant 0 : i32
    %c0_i32_1 = arith.constant 0 : i32
    return %c0_i32, %c0_i32_0 : i32, i32
  }
  func.func @transform_6(%arg0: i32) -> (i32, i32, i32) {
    %c0_i32 = arith.constant 0 : i32
    %c0_i32_0 = arith.constant 0 : i32
    %c0_i32_1 = arith.constant 0 : i32
    return %arg0, %c0_i32, %c0_i32_0 : i32, i32, i32
  }
  func.func @transform_7(%arg0: i32) -> (i32, i32, i32) {
    %c0_i32 = arith.constant 0 : i32
    %c0_i32_0 = arith.constant 0 : i32
    %c0_i32_1 = arith.constant 0 : i32
    return %arg0, %c0_i32, %c0_i32_0 : i32, i32, i32
  }
  func.func @transform_8(%arg0: i32) -> (i32, i32, i32) {
    %c0_i32 = arith.constant 0 : i32
    %c0_i32_0 = arith.constant 0 : i32
    %c0_i32_1 = arith.constant 0 : i32
    return %arg0, %c0_i32, %c0_i32_0 : i32, i32, i32
  }
}

module attributes {stable_mosaic.version = 11 : i64} {
  func.func @_attn_proj_kernel(%arg0: i32, %arg1: memref<1x8x8x16xbf16, #tpu.memory_space<vmem>>, %arg2: memref<1x8x16x16xbf16, #tpu.memory_space<vmem>>, %arg3: memref<1x8x16x16xbf16, #tpu.memory_space<vmem>>, %arg4: memref<128x128xbf16, #tpu.memory_space<vmem>>, %arg5: memref<1x128xf32, #tpu.memory_space<vmem>>, %arg6: memref<1x8x128xf32, #tpu.memory_space<vmem>>) attributes {dimension_semantics = [#tpu.dimension_semantics<parallel>], iteration_bounds = array<i64: 2>, scalar_prefetch = 0 : i64, scratch_operands = 0 : i64, tpu.core_type = #tpu.core_type<tc>, window_params = [{transform_indices = @transform_0, window_bounds = array<i64: 1, 8, 8, 16>}, {transform_indices = @transform_1, window_bounds = array<i64: 1, 8, 16, 16>}, {transform_indices = @transform_2, window_bounds = array<i64: 1, 8, 16, 16>}, {pipeline_mode = #tpu.pipeline_mode<synchronous>, transform_indices = @transform_3, window_bounds = array<i64: 128, 128>}, {pipeline_mode = #tpu.pipeline_mode<synchronous>, transform_indices = @transform_4, window_bounds = array<i64: 1, 128>}, {transform_indices = @transform_5, window_bounds = array<i64: 1, 8, 128>}]} {
    %c0 = arith.constant 0 : index
    %c0_0 = arith.constant 0 : index
    %c0_1 = arith.constant 0 : index
    %c0_2 = arith.constant 0 : index
    %0 = vector.load %arg1[%c0, %c0_0, %c0_1, %c0_2] : memref<1x8x8x16xbf16, #tpu.memory_space<vmem>>, vector<1x8x8x16xbf16>
    %1 = vector.shape_cast %0 : vector<1x8x8x16xbf16> to vector<8x8x16xbf16>
    %c0_3 = arith.constant 0 : index
    %c0_4 = arith.constant 0 : index
    %c0_5 = arith.constant 0 : index
    %c0_6 = arith.constant 0 : index
    %2 = vector.load %arg2[%c0_3, %c0_4, %c0_5, %c0_6] : memref<1x8x16x16xbf16, #tpu.memory_space<vmem>>, vector<1x8x16x16xbf16>
    %3 = vector.shape_cast %2 : vector<1x8x16x16xbf16> to vector<8x16x16xbf16>
    %c0_7 = arith.constant 0 : index
    %c0_8 = arith.constant 0 : index
    %c0_9 = arith.constant 0 : index
    %c0_10 = arith.constant 0 : index
    %4 = vector.load %arg3[%c0_7, %c0_8, %c0_9, %c0_10] : memref<1x8x16x16xbf16, #tpu.memory_space<vmem>>, vector<1x8x16x16xbf16>
    %5 = vector.shape_cast %4 : vector<1x8x16x16xbf16> to vector<8x16x16xbf16>
    "tpu.trace_start"() <{level = 10 : i32, message = "hqd,hkd->hqk"}> : () -> ()
    %cst = arith.constant dense<0.000000e+00> : vector<8x8x16xf32>
    %6 = tpu.matmul %1, %3, %cst {dimension_numbers = #tpu.dot_dimension_numbers<[2], [2], [1], [1], [0, 0, 0, 1, 1, 1], [0], [0]>} : vector<8x8x16xbf16>, vector<8x16x16xbf16>, vector<8x8x16xf32> -> vector<8x8x16xf32>
    "tpu.trace_stop"() : () -> ()
    %cst_11 = arith.constant dense<0xFF800000> : vector<8x8xf32>
    %7 = vector.multi_reduction <maximumf>, %6, %cst_11 [2] : vector<8x8x16xf32> to vector<8x8xf32>
    %8 = vector.shape_cast %7 : vector<8x8xf32> to vector<8x8x1xf32>
    %9 = vector.broadcast %8 : vector<8x8x1xf32> to vector<8x8x16xf32>
    %10 = arith.subf %6, %9 : vector<8x8x16xf32>
    %11 = math.exp %10 : vector<8x8x16xf32>
    %cst_12 = arith.constant dense<0.000000e+00> : vector<8x8xf32>
    %12 = vector.multi_reduction <add>, %11, %cst_12 [2] : vector<8x8x16xf32> to vector<8x8xf32>
    %13 = vector.shape_cast %12 : vector<8x8xf32> to vector<8x8x1xf32>
    %14 = tpu.reciprocal %13 {approx = true} : vector<8x8x1xf32> -> vector<8x8x1xf32>
    %15 = vector.broadcast %14 : vector<8x8x1xf32> to vector<8x8x16xf32>
    %16 = arith.mulf %11, %15 : vector<8x8x16xf32>
    %17 = arith.truncf %16 : vector<8x8x16xf32> to vector<8x8x16xbf16>
    "tpu.trace_start"() <{level = 10 : i32, message = "hqk,hkd->hqd"}> : () -> ()
    %cst_13 = arith.constant dense<0.000000e+00> : vector<8x8x16xf32>
    %18 = tpu.matmul %17, %5, %cst_13 {dimension_numbers = #tpu.dot_dimension_numbers<[2], [1], [1], [2], [0, 0, 0, 1, 1, 2], [0], [0]>} : vector<8x8x16xbf16>, vector<8x16x16xbf16>, vector<8x8x16xf32> -> vector<8x8x16xf32>
    %cst_14 = arith.constant 0.000000e+00 : f32
    "tpu.trace_stop"() : () -> ()
    %19 = vector.broadcast %cst_14 : f32 to vector<8x128xf32>
    %20 = vector.extract_strided_slice %18 {offsets = [0, 0, 0], sizes = [1, 8, 16], strides = [1, 1, 1]} : vector<8x8x16xf32> to vector<1x8x16xf32>
    %21 = vector.shape_cast %20 : vector<1x8x16xf32> to vector<8x16xf32>
    %22 = arith.truncf %21 : vector<8x16xf32> to vector<8x16xbf16>
    %c0_15 = arith.constant 0 : index
    %c0_16 = arith.constant 0 : index
    %23 = vector.load %arg4[%c0_15, %c0_16] : memref<128x128xbf16, #tpu.memory_space<vmem>>, vector<16x128xbf16>
    %cst_17 = arith.constant dense<0.000000e+00> : vector<8x128xf32>
    %24 = tpu.matmul %22, %23, %cst_17 {dimension_numbers = #tpu.dot_dimension_numbers<[1], [0], [0], [1], [0, 0, 1, 1], [], []>} : vector<8x16xbf16>, vector<16x128xbf16>, vector<8x128xf32> -> vector<8x128xf32>
    %25 = arith.addf %19, %24 : vector<8x128xf32>
    %26 = vector.extract_strided_slice %18 {offsets = [1, 0, 0], sizes = [1, 8, 16], strides = [1, 1, 1]} : vector<8x8x16xf32> to vector<1x8x16xf32>
    %27 = vector.shape_cast %26 : vector<1x8x16xf32> to vector<8x16xf32>
    %28 = arith.truncf %27 : vector<8x16xf32> to vector<8x16xbf16>
    %c16 = arith.constant 16 : index
    %c0_18 = arith.constant 0 : index
    %29 = vector.load %arg4[%c16, %c0_18] : memref<128x128xbf16, #tpu.memory_space<vmem>>, vector<16x128xbf16>
    %cst_19 = arith.constant dense<0.000000e+00> : vector<8x128xf32>
    %30 = tpu.matmul %28, %29, %cst_19 {dimension_numbers = #tpu.dot_dimension_numbers<[1], [0], [0], [1], [0, 0, 1, 1], [], []>} : vector<8x16xbf16>, vector<16x128xbf16>, vector<8x128xf32> -> vector<8x128xf32>
    %31 = arith.addf %25, %30 : vector<8x128xf32>
    %32 = vector.extract_strided_slice %18 {offsets = [2, 0, 0], sizes = [1, 8, 16], strides = [1, 1, 1]} : vector<8x8x16xf32> to vector<1x8x16xf32>
    %33 = vector.shape_cast %32 : vector<1x8x16xf32> to vector<8x16xf32>
    %34 = arith.truncf %33 : vector<8x16xf32> to vector<8x16xbf16>
    %c32 = arith.constant 32 : index
    %c0_20 = arith.constant 0 : index
    %35 = vector.load %arg4[%c32, %c0_20] : memref<128x128xbf16, #tpu.memory_space<vmem>>, vector<16x128xbf16>
    %cst_21 = arith.constant dense<0.000000e+00> : vector<8x128xf32>
    %36 = tpu.matmul %34, %35, %cst_21 {dimension_numbers = #tpu.dot_dimension_numbers<[1], [0], [0], [1], [0, 0, 1, 1], [], []>} : vector<8x16xbf16>, vector<16x128xbf16>, vector<8x128xf32> -> vector<8x128xf32>
    %37 = arith.addf %31, %36 : vector<8x128xf32>
    %38 = vector.extract_strided_slice %18 {offsets = [3, 0, 0], sizes = [1, 8, 16], strides = [1, 1, 1]} : vector<8x8x16xf32> to vector<1x8x16xf32>
    %39 = vector.shape_cast %38 : vector<1x8x16xf32> to vector<8x16xf32>
    %40 = arith.truncf %39 : vector<8x16xf32> to vector<8x16xbf16>
    %c48 = arith.constant 48 : index
    %c0_22 = arith.constant 0 : index
    %41 = vector.load %arg4[%c48, %c0_22] : memref<128x128xbf16, #tpu.memory_space<vmem>>, vector<16x128xbf16>
    %cst_23 = arith.constant dense<0.000000e+00> : vector<8x128xf32>
    %42 = tpu.matmul %40, %41, %cst_23 {dimension_numbers = #tpu.dot_dimension_numbers<[1], [0], [0], [1], [0, 0, 1, 1], [], []>} : vector<8x16xbf16>, vector<16x128xbf16>, vector<8x128xf32> -> vector<8x128xf32>
    %43 = arith.addf %37, %42 : vector<8x128xf32>
    %44 = vector.extract_strided_slice %18 {offsets = [4, 0, 0], sizes = [1, 8, 16], strides = [1, 1, 1]} : vector<8x8x16xf32> to vector<1x8x16xf32>
    %45 = vector.shape_cast %44 : vector<1x8x16xf32> to vector<8x16xf32>
    %46 = arith.truncf %45 : vector<8x16xf32> to vector<8x16xbf16>
    %c64 = arith.constant 64 : index
    %c0_24 = arith.constant 0 : index
    %47 = vector.load %arg4[%c64, %c0_24] : memref<128x128xbf16, #tpu.memory_space<vmem>>, vector<16x128xbf16>
    %cst_25 = arith.constant dense<0.000000e+00> : vector<8x128xf32>
    %48 = tpu.matmul %46, %47, %cst_25 {dimension_numbers = #tpu.dot_dimension_numbers<[1], [0], [0], [1], [0, 0, 1, 1], [], []>} : vector<8x16xbf16>, vector<16x128xbf16>, vector<8x128xf32> -> vector<8x128xf32>
    %49 = arith.addf %43, %48 : vector<8x128xf32>
    %50 = vector.extract_strided_slice %18 {offsets = [5, 0, 0], sizes = [1, 8, 16], strides = [1, 1, 1]} : vector<8x8x16xf32> to vector<1x8x16xf32>
    %51 = vector.shape_cast %50 : vector<1x8x16xf32> to vector<8x16xf32>
    %52 = arith.truncf %51 : vector<8x16xf32> to vector<8x16xbf16>
    %c80 = arith.constant 80 : index
    %c0_26 = arith.constant 0 : index
    %53 = vector.load %arg4[%c80, %c0_26] : memref<128x128xbf16, #tpu.memory_space<vmem>>, vector<16x128xbf16>
    %cst_27 = arith.constant dense<0.000000e+00> : vector<8x128xf32>
    %54 = tpu.matmul %52, %53, %cst_27 {dimension_numbers = #tpu.dot_dimension_numbers<[1], [0], [0], [1], [0, 0, 1, 1], [], []>} : vector<8x16xbf16>, vector<16x128xbf16>, vector<8x128xf32> -> vector<8x128xf32>
    %55 = arith.addf %49, %54 : vector<8x128xf32>
    %56 = vector.extract_strided_slice %18 {offsets = [6, 0, 0], sizes = [1, 8, 16], strides = [1, 1, 1]} : vector<8x8x16xf32> to vector<1x8x16xf32>
    %57 = vector.shape_cast %56 : vector<1x8x16xf32> to vector<8x16xf32>
    %58 = arith.truncf %57 : vector<8x16xf32> to vector<8x16xbf16>
    %c96 = arith.constant 96 : index
    %c0_28 = arith.constant 0 : index
    %59 = vector.load %arg4[%c96, %c0_28] : memref<128x128xbf16, #tpu.memory_space<vmem>>, vector<16x128xbf16>
    %cst_29 = arith.constant dense<0.000000e+00> : vector<8x128xf32>
    %60 = tpu.matmul %58, %59, %cst_29 {dimension_numbers = #tpu.dot_dimension_numbers<[1], [0], [0], [1], [0, 0, 1, 1], [], []>} : vector<8x16xbf16>, vector<16x128xbf16>, vector<8x128xf32> -> vector<8x128xf32>
    %61 = arith.addf %55, %60 : vector<8x128xf32>
    %62 = vector.extract_strided_slice %18 {offsets = [7, 0, 0], sizes = [1, 8, 16], strides = [1, 1, 1]} : vector<8x8x16xf32> to vector<1x8x16xf32>
    %63 = vector.shape_cast %62 : vector<1x8x16xf32> to vector<8x16xf32>
    %64 = arith.truncf %63 : vector<8x16xf32> to vector<8x16xbf16>
    %c112 = arith.constant 112 : index
    %c0_30 = arith.constant 0 : index
    %65 = vector.load %arg4[%c112, %c0_30] : memref<128x128xbf16, #tpu.memory_space<vmem>>, vector<16x128xbf16>
    %cst_31 = arith.constant dense<0.000000e+00> : vector<8x128xf32>
    %66 = tpu.matmul %64, %65, %cst_31 {dimension_numbers = #tpu.dot_dimension_numbers<[1], [0], [0], [1], [0, 0, 1, 1], [], []>} : vector<8x16xbf16>, vector<16x128xbf16>, vector<8x128xf32> -> vector<8x128xf32>
    %67 = arith.addf %61, %66 : vector<8x128xf32>
    %c0_32 = arith.constant 0 : index
    %c0_33 = arith.constant 0 : index
    %68 = vector.load %arg5[%c0_32, %c0_33] : memref<1x128xf32, #tpu.memory_space<vmem>>, vector<1x128xf32>
    %69 = vector.broadcast %68 : vector<1x128xf32> to vector<8x128xf32>
    %70 = arith.addf %67, %69 : vector<8x128xf32>
    %c0_34 = arith.constant 0 : index
    %c0_35 = arith.constant 0 : index
    %c0_36 = arith.constant 0 : index
    %71 = vector.load %arg6[%c0_34, %c0_35, %c0_36] : memref<1x8x128xf32, #tpu.memory_space<vmem>>, vector<1x8x128xf32>
    %72 = vector.shape_cast %71 : vector<1x8x128xf32> to vector<8x128xf32>
    %73 = vector.shape_cast %70 : vector<8x128xf32> to vector<1x8x128xf32>
    tpu.vector_store %arg6[%c0_34, %c0_35, %c0_36], %73 {strides = array<i32>} : memref<1x8x128xf32, #tpu.memory_space<vmem>>, vector<1x8x128xf32>,
    return
  }
  func.func @transform_0(%arg0: i32) -> (i32, i32, i32, i32) {
    %c0_i32 = arith.constant 0 : i32
    %c0_i32_0 = arith.constant 0 : i32
    %c0_i32_1 = arith.constant 0 : i32
    %c0_i32_2 = arith.constant 0 : i32
    return %arg0, %c0_i32, %c0_i32_0, %c0_i32_1 : i32, i32, i32, i32
  }
  func.func @transform_1(%arg0: i32) -> (i32, i32, i32, i32) {
    %c0_i32 = arith.constant 0 : i32
    %c0_i32_0 = arith.constant 0 : i32
    %c0_i32_1 = arith.constant 0 : i32
    %c0_i32_2 = arith.constant 0 : i32
    return %arg0, %c0_i32, %c0_i32_0, %c0_i32_1 : i32, i32, i32, i32
  }
  func.func @transform_2(%arg0: i32) -> (i32, i32, i32, i32) {
    %c0_i32 = arith.constant 0 : i32
    %c0_i32_0 = arith.constant 0 : i32
    %c0_i32_1 = arith.constant 0 : i32
    %c0_i32_2 = arith.constant 0 : i32
    return %arg0, %c0_i32, %c0_i32_0, %c0_i32_1 : i32, i32, i32, i32
  }
  func.func @transform_3(%arg0: i32) -> (i32, i32) {
    %c0_i32 = arith.constant 0 : i32
    %c0_i32_0 = arith.constant 0 : i32
    %c0_i32_1 = arith.constant 0 : i32
    return %c0_i32, %c0_i32_0 : i32, i32
  }
  func.func @transform_4(%arg0: i32) -> (i32, i32) {
    %c0_i32 = arith.constant 0 : i32
    %c0_i32_0 = arith.constant 0 : i32
    %c0_i32_1 = arith.constant 0 : i32
    return %c0_i32, %c0_i32_0 : i32, i32
  }
  func.func @transform_5(%arg0: i32) -> (i32, i32, i32) {
    %c0_i32 = arith.constant 0 : i32
    %c0_i32_0 = arith.constant 0 : i32
    %c0_i32_1 = arith.constant 0 : i32
    return %arg0, %c0_i32, %c0_i32_0 : i32, i32, i32
  }
}

</mosaic_0001>

<llo_original>
// kernel: attention_pallas.2
$region0: #{attention_pallas.2}
  #allocation0 [shape = 'u32[]', space=smem, size = 0x4, offset = 0x4, fixed_abs, tag = 'smem constant byte address 0x4 - core index']
  #allocation1 [shape = 'u32[144,128]{1,0:T(1,128)}', space=vmem, size = 0x12000, scoped, tag = 'internal scratch']
  %s0 = inlined_call_operand.vmem [shape: bf16[2,8,128], index: 0, kind: input, shape index: {}]
  %s1 = inlined_call_operand.vmem [shape: bf16[2,16,128], index: 1, kind: input, shape index: {}]
  %s2 = inlined_call_operand.vmem [shape: bf16[2,16,128], index: 2, kind: input, shape index: {}]
  %s3 = inlined_call_operand.vmem [shape: bf16[128,128], index: 3, kind: input, shape index: {}]
  %s4 = inlined_call_operand.vmem [shape: bf16[128,128], index: 4, kind: input, shape index: {}]
  %s5 = inlined_call_operand.vmem [shape: bf16[128,128], index: 5, kind: input, shape index: {}]
  %s6 = inlined_call_operand.vmem [shape: bf16[2,8,128], index: 6, kind: output, shape index: {0}]
  %s7 = inlined_call_operand.vmem [shape: bf16[2,16,128], index: 7, kind: output, shape index: {1}]
  %s8 = inlined_call_operand.vmem [shape: bf16[2,16,128], index: 8, kind: output, shape index: {2}]
  %9 = xla_tuple %s6, %s7, %s8
  %s10 = sld [smem:[#allocation0]]
  $region73: #{attention_pallas.2} parent=0
    _
  %s12 = ssub.s32 1, %s10
  %s13 = scalar_select 0, %s12, %s10
  loop: start=0, step=1, limit=4
  $region2: #{attention_pallas.2} parent=0 // loop_pre_header
    _
  $region3: #{attention_pallas.2} parent=0 // loop_header
    %s15 = sphi 0, %s19
    %p16 = scmp.ge.s32.totalorder %s15, 4
    %s25 = sphi 0, %s27
    %s28 = sphi 0, %s25
    %s29 = sphi 0, %s28
    %s45 = sphi 0, %s29
    %s51 = sphi 0, %s53
    %s54 = sphi 0, %s51
    %s55 = sphi 0, %s54
    %s71 = sphi 0, %s55
    %s77 = sphi 0, %s79
    %s80 = sphi 0, %s77
    %s81 = sphi 0, %s80
    %s97 = sphi 0, %s81
    %s101 = sphi 0, %s101
    %s103 = sphi 0, %s101
    %s104 = sphi 0, %s103
    %s118 = sphi 0, %s104
    %s122 = sphi 0, %s122
    %s124 = sphi 0, %s122
    %s125 = sphi 0, %s124
    %s139 = sphi 0, %s125
    %s143 = sphi 0, %s143
    %s145 = sphi 0, %s143
    %s146 = sphi 0, %s145
    %s160 = sphi 0, %s146
    %s166 = sphi 0, %s168
    %s169 = sphi 0, %s166
    %s170 = sphi 0, %s169
    %s186 = sphi 0, %s170
    %s192 = sphi 0, %s194
    %s195 = sphi 0, %s192
    %s196 = sphi 0, %s195
    %s212 = sphi 0, %s196
    %s218 = sphi 0, %s220
    %s221 = sphi 0, %s218
    %s222 = sphi 0, %s221
    %s238 = sphi 0, %s222
  $region4: #{attention_pallas.2} parent=0 // loop_header_branch
    %18 = sbr.rel (%p16) target = $region8
  $region5: #{attention_pallas.2} parent=0 // loop_body
    %s20 = ssub.s32 %s15, 1
    %s21 = ssub.s32 %s15, 2
    %s22 = sadd.s32 %s15, 1
    %s23 = ssub.s32 %s15, %s22
    %p24 = scmp.eq.s32.totalorder %s23, 0
    %s26 = sadd.s32 %s25, 1
    %s27 = scalar_select %p24, %s25, %s26
    %p30 = pneg %p24
    %p31 = scmp.eq.s32.totalorder %s15, 1
    %p32 = por %p30, %p31
    %p33 = scmp.ne.s32.totalorder %s25, %s28
    %p34 = scmp.eq.s32.totalorder %s15, 0
    %p35 = por %p33, %p34
    %p36 = scmp.ne.s32.totalorder %s25, %s28
    %p37 = scmp.eq.s32.totalorder %s20, 1
    %p38 = por %p36, %p37
    %p39 = scmp.ne.s32.totalorder %s28, %s29
    %p40 = scmp.eq.s32.totalorder %s20, 0
    %p41 = por %p39, %p40
    %p42 = scmp.ne.s32.totalorder %s28, %s29
    %p43 = scmp.eq.s32.totalorder %s21, 1
    %p44 = por %p42, %p43
    %p46 = scmp.ne.s32.totalorder %s29, %s45
    %p47 = scmp.eq.s32.totalorder %s21, 0
    %p48 = por %p46, %p47
    %s49 = ssub.s32 %s15, %s22
    %p50 = scmp.eq.s32.totalorder %s49, 0
    %s52 = sadd.s32 %s51, 1
    %s53 = scalar_select %p50, %s51, %s52
    %p56 = pneg %p50
    %p57 = scmp.eq.s32.totalorder %s15, 1
    %p58 = por %p56, %p57
    %p59 = scmp.ne.s32.totalorder %s51, %s54
    %p60 = scmp.eq.s32.totalorder %s15, 0
    %p61 = por %p59, %p60
    %p62 = scmp.ne.s32.totalorder %s51, %s54
    %p63 = scmp.eq.s32.totalorder %s20, 1
    %p64 = por %p62, %p63
    %p65 = scmp.ne.s32.totalorder %s54, %s55
    %p66 = scmp.eq.s32.totalorder %s20, 0
    %p67 = por %p65, %p66
    %p68 = scmp.ne.s32.totalorder %s54, %s55
    %p69 = scmp.eq.s32.totalorder %s21, 1
    %p70 = por %p68, %p69
    %p72 = scmp.ne.s32.totalorder %s55, %s71
    %p73 = scmp.eq.s32.totalorder %s21, 0
    %p74 = por %p72, %p73
    %s75 = ssub.s32 %s15, %s22
    %p76 = scmp.eq.s32.totalorder %s75, 0
    %s78 = sadd.s32 %s77, 1
    %s79 = scalar_select %p76, %s77, %s78
    %p82 = pneg %p76
    %p83 = scmp.eq.s32.totalorder %s15, 1
    %p84 = por %p82, %p83
    %p85 = scmp.ne.s32.totalorder %s77, %s80
    %p86 = scmp.eq.s32.totalorder %s15, 0
    %p87 = por %p85, %p86
    %p88 = scmp.ne.s32.totalorder %s77, %s80
    %p89 = scmp.eq.s32.totalorder %s20, 1
    %p90 = por %p88, %p89
    %p91 = scmp.ne.s32.totalorder %s80, %s81
    %p92 = scmp.eq.s32.totalorder %s20, 0
    %p93 = por %p91, %p92
    %p94 = scmp.ne.s32.totalorder %s80, %s81
    %p95 = scmp.eq.s32.totalorder %s21, 1
    %p96 = por %p94, %p95
    %p98 = scmp.ne.s32.totalorder %s81, %s97
    %p99 = scmp.eq.s32.totalorder %s21, 0
    %p100 = por %p98, %p99
    %s102 = sadd.s32 %s101, 1
    %p105 = scmp.eq.s32.totalorder %s15, 1
    %p106 = scmp.ne.s32.totalorder %s101, %s103
    %p107 = scmp.eq.s32.totalorder %s15, 0
    %p108 = por %p106, %p107
    %p109 = scmp.ne.s32.totalorder %s101, %s103
    %p110 = scmp.eq.s32.totalorder %s20, 1
    %p111 = por %p109, %p110
    %p112 = scmp.ne.s32.totalorder %s103, %s104
    %p113 = scmp.eq.s32.totalorder %s20, 0
    %p114 = por %p112, %p113
    %p115 = scmp.ne.s32.totalorder %s103, %s104
    %p116 = scmp.eq.s32.totalorder %s21, 1
    %p117 = por %p115, %p116
    %p119 = scmp.ne.s32.totalorder %s104, %s118
    %p120 = scmp.eq.s32.totalorder %s21, 0
    %p121 = por %p119, %p120
    %s123 = sadd.s32 %s122, 1
    %p126 = scmp.eq.s32.totalorder %s15, 1
    %p127 = scmp.ne.s32.totalorder %s122, %s124
    %p128 = scmp.eq.s32.totalorder %s15, 0
    %p129 = por %p127, %p128
    %p130 = scmp.ne.s32.totalorder %s122, %s124
    %p131 = scmp.eq.s32.totalorder %s20, 1
    %p132 = por %p130, %p131
    %p133 = scmp.ne.s32.totalorder %s124, %s125
    %p134 = scmp.eq.s32.totalorder %s20, 0
    %p135 = por %p133, %p134
    %p136 = scmp.ne.s32.totalorder %s124, %s125
    %p137 = scmp.eq.s32.totalorder %s21, 1
    %p138 = por %p136, %p137
    %p140 = scmp.ne.s32.totalorder %s125, %s139
    %p141 = scmp.eq.s32.totalorder %s21, 0
    %p142 = por %p140, %p141
    %s144 = sadd.s32 %s143, 1
    %p147 = scmp.eq.s32.totalorder %s15, 1
    %p148 = scmp.ne.s32.totalorder %s143, %s145
    %p149 = scmp.eq.s32.totalorder %s15, 0
    %p150 = por %p148, %p149
    %p151 = scmp.ne.s32.totalorder %s143, %s145
    %p152 = scmp.eq.s32.totalorder %s20, 1
    %p153 = por %p151, %p152
    %p154 = scmp.ne.s32.totalorder %s145, %s146
    %p155 = scmp.eq.s32.totalorder %s20, 0
    %p156 = por %p154, %p155
    %p157 = scmp.ne.s32.totalorder %s145, %s146
    %p158 = scmp.eq.s32.totalorder %s21, 1
    %p159 = por %p157, %p158
    %p161 = scmp.ne.s32.totalorder %s146, %s160
    %p162 = scmp.eq.s32.totalorder %s21, 0
    %p163 = por %p161, %p162
    %s164 = ssub.s32 %s15, %s22
    %p165 = scmp.eq.s32.totalorder %s164, 0
    %s167 = sadd.s32 %s166, 1
    %s168 = scalar_select %p165, %s166, %s167
    %p171 = pneg %p165
    %p172 = scmp.eq.s32.totalorder %s15, 1
    %p173 = por %p171, %p172
    %p174 = scmp.ne.s32.totalorder %s166, %s169
    %p175 = scmp.eq.s32.totalorder %s15, 0
    %p176 = por %p174, %p175
    %p177 = scmp.ne.s32.totalorder %s166, %s169
    %p178 = scmp.eq.s32.totalorder %s20, 1
    %p179 = por %p177, %p178
    %p180 = scmp.ne.s32.totalorder %s169, %s170
    %p181 = scmp.eq.s32.totalorder %s20, 0
    %p182 = por %p180, %p181
    %p183 = scmp.ne.s32.totalorder %s169, %s170
    %p184 = scmp.eq.s32.totalorder %s21, 1
    %p185 = por %p183, %p184
    %p187 = scmp.ne.s32.totalorder %s170, %s186
    %p188 = scmp.eq.s32.totalorder %s21, 0
    %p189 = por %p187, %p188
    %s190 = ssub.s32 %s15, %s22
    %p191 = scmp.eq.s32.totalorder %s190, 0
    %s193 = sadd.s32 %s192, 1
    %s194 = scalar_select %p191, %s192, %s193
    %p197 = pneg %p191
    %p198 = scmp.eq.s32.totalorder %s15, 1
    %p199 = por %p197, %p198
    %p200 = scmp.ne.s32.totalorder %s192, %s195
    %p201 = scmp.eq.s32.totalorder %s15, 0
    %p202 = por %p200, %p201
    %p203 = scmp.ne.s32.totalorder %s192, %s195
    %p204 = scmp.eq.s32.totalorder %s20, 1
    %p205 = por %p203, %p204
    %p206 = scmp.ne.s32.totalorder %s195, %s196
    %p207 = scmp.eq.s32.totalorder %s20, 0
    %p208 = por %p206, %p207
    %p209 = scmp.ne.s32.totalorder %s195, %s196
    %p210 = scmp.eq.s32.totalorder %s21, 1
    %p211 = por %p209, %p210
    %p213 = scmp.ne.s32.totalorder %s196, %s212
    %p214 = scmp.eq.s32.totalorder %s21, 0
    %p215 = por %p213, %p214
    %s216 = ssub.s32 %s15, %s22
    %p217 = scmp.eq.s32.totalorder %s216, 0
    %s219 = sadd.s32 %s218, 1
    %s220 = scalar_select %p217, %s218, %s219
    %p223 = pneg %p217
    %p224 = scmp.eq.s32.totalorder %s15, 1
    %p225 = por %p223, %p224
    %p226 = scmp.ne.s32.totalorder %s218, %s221
    %p227 = scmp.eq.s32.totalorder %s15, 0
    %p228 = por %p226, %p227
    %p229 = scmp.ne.s32.totalorder %s218, %s221
    %p230 = scmp.eq.s32.totalorder %s20, 1
    %p231 = por %p229, %p230
    %p232 = scmp.ne.s32.totalorder %s221, %s222
    %p233 = scmp.eq.s32.totalorder %s20, 0
    %p234 = por %p232, %p233
    %p235 = scmp.ne.s32.totalorder %s221, %s222
    %p236 = scmp.eq.s32.totalorder %s21, 1
    %p237 = por %p235, %p236
    %p239 = scmp.ne.s32.totalorder %s222, %s238
    %p240 = scmp.eq.s32.totalorder %s21, 0
    %p241 = por %p239, %p240
    %p242 = scmp.le.s32.totalorder 1, %s15
    %p243 = scmp.lt.s32.totalorder %s15, 3
    %p244 = pnand %p242, %p243
    %p245 = pneg %p244
    // Predicated region
    $region9: #{attention_pallas.2} parent=5 // pred_check
      _
    $region10: #{attention_pallas.2} parent=5 // pred_check_branch
      %247 = sbr.rel (%p244) target = $region12
    $region11: #{attention_pallas.2} parent=5 // pred_region
      %s248 = ssub.s32 %s15, 1
      // Predicated region
      $region13: #{attention_pallas.2} parent=11 // pred_check
        %p249 = pneg %p114
      $region14: #{attention_pallas.2} parent=11 // pred_check_branch
        %251 = sbr.rel (%p249) target = $region16
      $region15: #{attention_pallas.2} parent=11 // pred_region
        _
      $region16: #{attention_pallas.2} parent=11 // pred_fallthru
        _
      // Predicated region
      $region17: #{attention_pallas.2} parent=11 // pred_check
        %p252 = pneg %p135
      $region18: #{attention_pallas.2} parent=11 // pred_check_branch
        %254 = sbr.rel (%p252) target = $region20
      $region19: #{attention_pallas.2} parent=11 // pred_region
        _
      $region20: #{attention_pallas.2} parent=11 // pred_fallthru
        _
      // Predicated region
      $region21: #{attention_pallas.2} parent=11 // pred_check
        %p255 = pneg %p156
      $region22: #{attention_pallas.2} parent=11 // pred_check_branch
        %257 = sbr.rel (%p255) target = $region24
      $region23: #{attention_pallas.2} parent=11 // pred_region
        _
      $region24: #{attention_pallas.2} parent=11 // pred_fallthru
        _
    $region12: #{attention_pallas.2} parent=5 // pred_fallthru
      _
    %p258 = scmp.lt.s32.totalorder %s15, 2
    // Predicated region
    $region25: #{attention_pallas.2} parent=5 // pred_check
      %p259 = pneg %p258
    $region26: #{attention_pallas.2} parent=5 // pred_check_branch
      %261 = sbr.rel (%p259) target = $region28
    $region27: #{attention_pallas.2} parent=5 // pred_region
      // Predicated region
      $region29: #{attention_pallas.2} parent=27 // pred_check
        %p262 = pneg %p35
      $region30: #{attention_pallas.2} parent=27 // pred_check_branch
        %264 = sbr.rel (%p262) target = $region32
      $region31: #{attention_pallas.2} parent=27 // pred_region
        %p265 = scmp.lt.s32.totalorder %s15, 1
        %s266 = scalar_select %p265, %s15, 1
        %s267 = smul.addr %s266, 4
        %s268 = scalar_lea.vmem %s0, %s267
      $region32: #{attention_pallas.2} parent=27 // pred_fallthru
        _
      // Predicated region
      $region33: #{attention_pallas.2} parent=27 // pred_check
        %p269 = pneg %p61
      $region34: #{attention_pallas.2} parent=27 // pred_check_branch
        %271 = sbr.rel (%p269) target = $region36
      $region35: #{attention_pallas.2} parent=27 // pred_region
        %p272 = scmp.lt.s32.totalorder %s15, 1
        %s273 = scalar_select %p272, %s15, 1
        %s274 = smul.addr %s273, 2
        %s275 = smul.addr %s274, 4
        %s276 = scalar_lea.vmem %s1, %s275
      $region36: #{attention_pallas.2} parent=27 // pred_fallthru
        _
      // Predicated region
      $region37: #{attention_pallas.2} parent=27 // pred_check
        %p277 = pneg %p87
      $region38: #{attention_pallas.2} parent=27 // pred_check_branch
        %279 = sbr.rel (%p277) target = $region40
      $region39: #{attention_pallas.2} parent=27 // pred_region
        %p280 = scmp.lt.s32.totalorder %s15, 1
        %s281 = scalar_select %p280, %s15, 1
        %s282 = smul.addr %s281, 2
        %s283 = smul.addr %s282, 4
        %s284 = scalar_lea.vmem %s2, %s283
      $region40: #{attention_pallas.2} parent=27 // pred_fallthru
        _
    $region28: #{attention_pallas.2} parent=5 // pred_fallthru
      _
    %p285 = scmp.le.s32.totalorder 1, %s15
    %p286 = scmp.lt.s32.totalorder %s15, 3
    %p287 = pnand %p285, %p286
    %p288 = pneg %p287
    // Predicated region
    $region41: #{attention_pallas.2} parent=5 // pred_check
      _
    $region42: #{attention_pallas.2} parent=5 // pred_check_branch
      %290 = sbr.rel (%p287) target = $region44
    $region43: #{attention_pallas.2} parent=5 // pred_region
      %s291 = ssub.s32 %s15, 1
      %p292 = scmp.lt.s32.totalorder %s20, 1
      %s293 = scalar_select %p292, %s20, 1
      %s294 = smul.addr %s293, 4
      %s295 = scalar_lea.vmem %s0, %s294
      %p296 = pneg %p41
      %p297 = pneg %p38
      %p298 = scmp.lt.s32.totalorder %s20, 1
      %s299 = scalar_select %p298, %s20, 1
      %s300 = smul.addr %s299, 2
      %s301 = smul.addr %s300, 4
      %s302 = scalar_lea.vmem %s1, %s301
      %p303 = pneg %p67
      %p304 = pneg %p64
      %p305 = scmp.lt.s32.totalorder %s20, 1
      %s306 = scalar_select %p305, %s20, 1
      %s307 = smul.addr %s306, 2
      %s308 = smul.addr %s307, 4
      %s309 = scalar_lea.vmem %s2, %s308
      %p310 = pneg %p93
      %p311 = pneg %p90
      %p312 = pneg %p114
      %p313 = pneg %p111
      %p314 = pneg %p135
      %p315 = pneg %p132
      %p316 = pneg %p156
      %p317 = pneg %p153
      %p318 = pneg %p182
      %p319 = pneg %p179
      %p320 = scmp.lt.s32.totalorder %s20, 1
      %s321 = scalar_select %p320, %s20, 1
      %s322 = smul.addr %s321, 4
      %s323 = scalar_lea.vmem %s6, %s322
      %p324 = pneg %p208
      %p325 = pneg %p205
      %p326 = scmp.lt.s32.totalorder %s20, 1
      %s327 = scalar_select %p326, %s20, 1
      %s328 = smul.addr %s327, 2
      %s329 = smul.addr %s328, 4
      %s330 = scalar_lea.vmem %s7, %s329
      %p331 = pneg %p234
      %p332 = pneg %p231
      %p333 = scmp.lt.s32.totalorder %s20, 1
      %s334 = scalar_select %p333, %s20, 1
      %s335 = smul.addr %s334, 2
      %s336 = smul.addr %s335, 4
      %s337 = scalar_lea.vmem %s8, %s336
      %p338 = scmp.lt.s32.totalorder %s20, 1
      %s339 = scalar_select %p338, %s20, 1
      %s340 = smul.addr %s339, 4
      %s341 = scalar_lea.vmem %s0, %s340
      %p342 = scmp.lt.s32.totalorder %s20, 1
      %s343 = scalar_select %p342, %s20, 1
      %s344 = smul.addr %s343, 2
      %s345 = smul.addr %s344, 4
      %s346 = scalar_lea.vmem %s1, %s345
      %p347 = scmp.lt.s32.totalorder %s20, 1
      %s348 = scalar_select %p347, %s20, 1
      %s349 = smul.addr %s348, 2
      %s350 = smul.addr %s349, 4
      %s351 = scalar_lea.vmem %s2, %s350
      %p352 = scmp.lt.s32.totalorder %s20, 1
      %s353 = scalar_select %p352, %s20, 1
      %s354 = smul.addr %s353, 4
      %s355 = scalar_lea.vmem %s6, %s354
      %p356 = scmp.lt.s32.totalorder %s20, 1
      %s357 = scalar_select %p356, %s20, 1
      %s358 = smul.addr %s357, 2
      %s359 = smul.addr %s358, 4
      %s360 = scalar_lea.vmem %s7, %s359
      %p361 = scmp.lt.s32.totalorder %s20, 1
      %s362 = scalar_select %p361, %s20, 1
      %s363 = smul.addr %s362, 2
      %s364 = smul.addr %s363, 4
      %s365 = scalar_lea.vmem %s8, %s364
      %v367 = vld [vmem:[%s341] sm:$0xf]
      %v368 = vld [vmem:[%s3] sm:$0xf]
      %v369 = vld [vmem:[%s3 + $0x4] sm:$0xf]
      %v370 = vld [vmem:[%s3 + $0x8] sm:$0xf]
      %v371 = vld [vmem:[%s3 + $0xc] sm:$0xf]
      %v372 = vld [vmem:[%s3 + $0x10] sm:$0xf]
      %v373 = vld [vmem:[%s3 + $0x14] sm:$0xf]
      %v374 = vld [vmem:[%s3 + $0x18] sm:$0xf]
      %v375 = vld [vmem:[%s3 + $0x1c] sm:$0xf]
      %v376 = vld [vmem:[%s3 + $0x20] sm:$0xf]
      %v377 = vld [vmem:[%s3 + $0x24] sm:$0xf]
      %v378 = vld [vmem:[%s3 + $0x28] sm:$0xf]
      %v379 = vld [vmem:[%s3 + $0x2c] sm:$0xf]
      %v380 = vld [vmem:[%s3 + $0x30] sm:$0xf]
      %v381 = vld [vmem:[%s3 + $0x34] sm:$0xf]
      %v382 = vld [vmem:[%s3 + $0x38] sm:$0xf]
      %v383 = vld [vmem:[%s3 + $0x3c] sm:$0xf]
      %v400 = vunpack.c.l.b16 %v368
      %v401 = vunpack.c.l.b16 %v369
      %v402 = vunpack.c.l.b16 %v370
      %v403 = vunpack.c.l.b16 %v371
      %v404 = vunpack.c.l.b16 %v372
      %v405 = vunpack.c.l.b16 %v373
      %v406 = vunpack.c.l.b16 %v374
      %v407 = vunpack.c.l.b16 %v375
      %v408 = vunpack.c.l.b16 %v376
      %v409 = vunpack.c.l.b16 %v377
      %v410 = vunpack.c.l.b16 %v378
      %v411 = vunpack.c.l.b16 %v379
      %v412 = vunpack.c.l.b16 %v380
      %v413 = vunpack.c.l.b16 %v381
      %v414 = vunpack.c.l.b16 %v382
      %v415 = vunpack.c.l.b16 %v383
      %v416 = vpack.c.b16 %v401, %v400
      %v417 = vpack.c.b16 %v403, %v402
      %v418 = vpack.c.b16 %v405, %v404
      %v419 = vpack.c.b16 %v407, %v406
      %v420 = vpack.c.b16 %v409, %v408
      %v421 = vpack.c.b16 %v411, %v410
      %v422 = vpack.c.b16 %v413, %v412
      %v423 = vpack.c.b16 %v415, %v414
      %432 = vmatprep.subr.bf16.mxu0 0
      %433 = vmatpush1.bf16.msra.mxu0 %v423
      %434 = vmatprep.subr.bf16.mxu0 0
      %435 = vmatpush1.bf16.msra.mxu0 %v422
      %436 = vmatprep.subr.bf16.mxu0 0
      %437 = vmatpush1.bf16.msra.mxu0 %v421
      %438 = vmatprep.subr.bf16.mxu0 0
      %439 = vmatpush1.bf16.msra.mxu0 %v420
      %440 = vmatprep.subr.bf16.mxu0 0
      %441 = vmatpush1.bf16.msra.mxu0 %v419
      %442 = vmatprep.subr.bf16.mxu0 0
      %443 = vmatpush1.bf16.msra.mxu0 %v418
      %444 = vmatprep.subr.bf16.mxu0 0
      %445 = vmatpush1.bf16.msra.mxu0 %v417
      %446 = vmatprep.subr.bf16.mxu0 0
      %447 = vmatpush1.bf16.msra.mxu0 %v416
      %448 = vmatprep.subr.bf16.mxu0 0
      %449 = vmatpush2.bf16.msra.mxu0 0
      %450 = vmatprep.subr.bf16.mxu0 0
      %451 = vmatpush2.bf16.msra.mxu0 0
      %452 = vmatprep.subr.bf16.mxu0 0
      %453 = vmatpush2.bf16.msra.mxu0 0
      %454 = vmatprep.subr.bf16.mxu0 0
      %455 = vmatpush2.bf16.msra.mxu0 0
      %456 = vmatprep.subr.bf16.mxu0 0
      %457 = vmatpush2.bf16.msra.mxu0 0
      %458 = vmatprep.subr.bf16.mxu0 0
      %459 = vmatpush2.bf16.msra.mxu0 0
      %460 = vmatprep.subr.bf16.mxu0 0
      %461 = vmatpush2.bf16.msra.mxu0 0
      %462 = vmatprep.subr.bf16.mxu0 0
      %463 = vmatpush2.bf16.msra.mxu0 0
      %464 = vmatprep.mubr.bf16.mxu0 0
      %465 = vmatmul.mubr.bf16.gmra.mxu0 %v367
      %v466 = vpop.f32.mrf.mxu0
      %v467 = vadd.f32 0.0, %v466
      %v468 = vpop.f32.mrf.mxu0
      %v469 = vpop.f32.mrf.mxu0
      %v470 = vpop.f32.mrf.mxu0
      %471 = vdwg.mxu0
      %v472 = vpack.c.bf16 %v467, %v467
      %473 = vst [vmem:[%s355] sm:$0xf] %v472
      %v474 = vld [vmem:[%s346] sm:$0xf]
      %v475 = vld [vmem:[%s346 + $0x4] sm:$0xf]
      %v476 = vld [vmem:[%s4] sm:$0xf]
      %v477 = vld [vmem:[%s4 + $0x4] sm:$0xf]
      %v478 = vld [vmem:[%s4 + $0x8] sm:$0xf]
      %v479 = vld [vmem:[%s4 + $0xc] sm:$0xf]
      %v480 = vld [vmem:[%s4 + $0x10] sm:$0xf]
      %v481 = vld [vmem:[%s4 + $0x14] sm:$0xf]
      %v482 = vld [vmem:[%s4 + $0x18] sm:$0xf]
      %v483 = vld [vmem:[%s4 + $0x1c] sm:$0xf]
      %v484 = vld [vmem:[%s4 + $0x20] sm:$0xf]
      %v485 = vld [vmem:[%s4 + $0x24] sm:$0xf]
      %v486 = vld [vmem:[%s4 + $0x28] sm:$0xf]
      %v487 = vld [vmem:[%s4 + $0x2c] sm:$0xf]
      %v488 = vld [vmem:[%s4 + $0x30] sm:$0xf]
      %v489 = vld [vmem:[%s4 + $0x34] sm:$0xf]
      %v490 = vld [vmem:[%s4 + $0x38] sm:$0xf]
      %v491 = vld [vmem:[%s4 + $0x3c] sm:$0xf]
      %v494 = vunpack.c.l.b16 %v474
      %v495 = vunpack.c.l.b16 %v475
      %v496 = vpack.c.b16 %v495, %v494
      %v514 = vunpack.c.l.b16 %v476
      %v515 = vunpack.c.l.b16 %v477
      %v516 = vunpack.c.l.b16 %v478
      %v517 = vunpack.c.l.b16 %v479
      %v518 = vunpack.c.l.b16 %v480
      %v519 = vunpack.c.l.b16 %v481
      %v520 = vunpack.c.l.b16 %v482
      %v521 = vunpack.c.l.b16 %v483
      %v522 = vunpack.c.l.b16 %v484
      %v523 = vunpack.c.l.b16 %v485
      %v524 = vunpack.c.l.b16 %v486
      %v525 = vunpack.c.l.b16 %v487
      %v526 = vunpack.c.l.b16 %v488
      %v527 = vunpack.c.l.b16 %v489
      %v528 = vunpack.c.l.b16 %v490
      %v529 = vunpack.c.l.b16 %v491
      %v530 = vpack.c.b16 %v515, %v514
      %v531 = vpack.c.b16 %v517, %v516
      %v532 = vpack.c.b16 %v519, %v518
      %v533 = vpack.c.b16 %v521, %v520
      %v534 = vpack.c.b16 %v523, %v522
      %v535 = vpack.c.b16 %v525, %v524
      %v536 = vpack.c.b16 %v527, %v526
      %v537 = vpack.c.b16 %v529, %v528
      %546 = vmatprep.subr.bf16.mxu0 0
      %547 = vmatpush1.bf16.msra.mxu0 %v537
      %548 = vmatprep.subr.bf16.mxu0 0
      %549 = vmatpush1.bf16.msra.mxu0 %v536
      %550 = vmatprep.subr.bf16.mxu0 0
      %551 = vmatpush1.bf16.msra.mxu0 %v535
      %552 = vmatprep.subr.bf16.mxu0 0
      %553 = vmatpush1.bf16.msra.mxu0 %v534
      %554 = vmatprep.subr.bf16.mxu0 0
      %555 = vmatpush1.bf16.msra.mxu0 %v533
      %556 = vmatprep.subr.bf16.mxu0 0
      %557 = vmatpush1.bf16.msra.mxu0 %v532
      %558 = vmatprep.subr.bf16.mxu0 0
      %559 = vmatpush1.bf16.msra.mxu0 %v531
      %560 = vmatprep.subr.bf16.mxu0 0
      %561 = vmatpush1.bf16.msra.mxu0 %v530
      %562 = vmatprep.subr.bf16.mxu0 0
      %563 = vmatpush2.bf16.msra.mxu0 0
      %564 = vmatprep.subr.bf16.mxu0 0
      %565 = vmatpush2.bf16.msra.mxu0 0
      %566 = vmatprep.subr.bf16.mxu0 0
      %567 = vmatpush2.bf16.msra.mxu0 0
      %568 = vmatprep.subr.bf16.mxu0 0
      %569 = vmatpush2.bf16.msra.mxu0 0
      %570 = vmatprep.subr.bf16.mxu0 0
      %571 = vmatpush2.bf16.msra.mxu0 0
      %572 = vmatprep.subr.bf16.mxu0 0
      %573 = vmatpush2.bf16.msra.mxu0 0
      %574 = vmatprep.subr.bf16.mxu0 0
      %575 = vmatpush2.bf16.msra.mxu0 0
      %576 = vmatprep.subr.bf16.mxu0 0
      %577 = vmatpush2.bf16.msra.mxu0 0
      %578 = vmatprep.mubr.bf16.mxu0 0
      %579 = vmatmul.mubr.bf16.gmra.mxu0 %v496
      %v580 = vpop.f32.mrf.mxu0
      %v581 = vadd.f32 0.0, %v580
      %v582 = vpop.f32.mrf.mxu0
      %v583 = vpop.f32.mrf.mxu0
      %v584 = vadd.f32 0.0, %v583
      %v585 = vpop.f32.mrf.mxu0
      %586 = vdwg.mxu0
      %v587 = vpack.c.bf16 %v584, %v581
      %v589 = vunpack.c.l.b16 %v587
      %v590 = vunpack.c.h.b16 %v587
      %v591 = vpack.c.b16 %v589, %v589
      %v592 = vpack.c.b16 %v590, %v590
      %595 = vst [vmem:[%s360] sm:$0xf] %v591
      %596 = vst [vmem:[%s360 + $0x4] sm:$0xf] %v592
      %v597 = vld [vmem:[%s351] sm:$0xf]
      %v598 = vld [vmem:[%s351 + $0x4] sm:$0xf]
      %v599 = vld [vmem:[%s5] sm:$0xf]
      %v600 = vld [vmem:[%s5 + $0x4] sm:$0xf]
      %v601 = vld [vmem:[%s5 + $0x8] sm:$0xf]
      %v602 = vld [vmem:[%s5 + $0xc] sm:$0xf]
      %v603 = vld [vmem:[%s5 + $0x10] sm:$0xf]
      %v604 = vld [vmem:[%s5 + $0x14] sm:$0xf]
      %v605 = vld [vmem:[%s5 + $0x18] sm:$0xf]
      %v606 = vld [vmem:[%s5 + $0x1c] sm:$0xf]
      %v607 = vld [vmem:[%s5 + $0x20] sm:$0xf]
      %v608 = vld [vmem:[%s5 + $0x24] sm:$0xf]
      %v609 = vld [vmem:[%s5 + $0x28] sm:$0xf]
      %v610 = vld [vmem:[%s5 + $0x2c] sm:$0xf]
      %v611 = vld [vmem:[%s5 + $0x30] sm:$0xf]
      %v612 = vld [vmem:[%s5 + $0x34] sm:$0xf]
      %v613 = vld [vmem:[%s5 + $0x38] sm:$0xf]
      %v614 = vld [vmem:[%s5 + $0x3c] sm:$0xf]
      %v617 = vunpack.c.l.b16 %v597
      %v618 = vunpack.c.l.b16 %v598
      %v619 = vpack.c.b16 %v618, %v617
      %v637 = vunpack.c.l.b16 %v599
      %v638 = vunpack.c.l.b16 %v600
      %v639 = vunpack.c.l.b16 %v601
      %v640 = vunpack.c.l.b16 %v602
      %v641 = vunpack.c.l.b16 %v603
      %v642 = vunpack.c.l.b16 %v604
      %v643 = vunpack.c.l.b16 %v605
      %v644 = vunpack.c.l.b16 %v606
      %v645 = vunpack.c.l.b16 %v607
      %v646 = vunpack.c.l.b16 %v608
      %v647 = vunpack.c.l.b16 %v609
      %v648 = vunpack.c.l.b16 %v610
      %v649 = vunpack.c.l.b16 %v611
      %v650 = vunpack.c.l.b16 %v612
      %v651 = vunpack.c.l.b16 %v613
      %v652 = vunpack.c.l.b16 %v614
      %v653 = vpack.c.b16 %v638, %v637
      %v654 = vpack.c.b16 %v640, %v639
      %v655 = vpack.c.b16 %v642, %v641
      %v656 = vpack.c.b16 %v644, %v643
      %v657 = vpack.c.b16 %v646, %v645
      %v658 = vpack.c.b16 %v648, %v647
      %v659 = vpack.c.b16 %v650, %v649
      %v660 = vpack.c.b16 %v652, %v651
      %669 = vmatprep.subr.bf16.mxu0 0
      %670 = vmatpush1.bf16.msra.mxu0 %v660
      %671 = vmatprep.subr.bf16.mxu0 0
      %672 = vmatpush1.bf16.msra.mxu0 %v659
      %673 = vmatprep.subr.bf16.mxu0 0
      %674 = vmatpush1.bf16.msra.mxu0 %v658
      %675 = vmatprep.subr.bf16.mxu0 0
      %676 = vmatpush1.bf16.msra.mxu0 %v657
      %677 = vmatprep.subr.bf16.mxu0 0
      %678 = vmatpush1.bf16.msra.mxu0 %v656
      %679 = vmatprep.subr.bf16.mxu0 0
      %680 = vmatpush1.bf16.msra.mxu0 %v655
      %681 = vmatprep.subr.bf16.mxu0 0
      %682 = vmatpush1.bf16.msra.mxu0 %v654
      %683 = vmatprep.subr.bf16.mxu0 0
      %684 = vmatpush1.bf16.msra.mxu0 %v653
      %685 = vmatprep.subr.bf16.mxu0 0
      %686 = vmatpush2.bf16.msra.mxu0 0
      %687 = vmatprep.subr.bf16.mxu0 0
      %688 = vmatpush2.bf16.msra.mxu0 0
      %689 = vmatprep.subr.bf16.mxu0 0
      %690 = vmatpush2.bf16.msra.mxu0 0
      %691 = vmatprep.subr.bf16.mxu0 0
      %692 = vmatpush2.bf16.msra.mxu0 0
      %693 = vmatprep.subr.bf16.mxu0 0
      %694 = vmatpush2.bf16.msra.mxu0 0
      %695 = vmatprep.subr.bf16.mxu0 0
      %696 = vmatpush2.bf16.msra.mxu0 0
      %697 = vmatprep.subr.bf16.mxu0 0
      %698 = vmatpush2.bf16.msra.mxu0 0
      %699 = vmatprep.subr.bf16.mxu0 0
      %700 = vmatpush2.bf16.msra.mxu0 0
      %701 = vmatprep.mubr.bf16.mxu0 0
      %702 = vmatmul.mubr.bf16.gmra.mxu0 %v619
      %v703 = vpop.f32.mrf.mxu0
      %v704 = vadd.f32 0.0, %v703
      %v705 = vpop.f32.mrf.mxu0
      %v706 = vpop.f32.mrf.mxu0
      %v707 = vadd.f32 0.0, %v706
      %v708 = vpop.f32.mrf.mxu0
      %709 = vdwg.mxu0
      %v710 = vpack.c.bf16 %v707, %v704
      %v712 = vunpack.c.l.b16 %v710
      %v713 = vunpack.c.h.b16 %v710
      %v714 = vpack.c.b16 %v712, %v712
      %v715 = vpack.c.b16 %v713, %v713
      %718 = vst [vmem:[%s365] sm:$0xf] %v714
      %719 = vst [vmem:[%s365 + $0x4] sm:$0xf] %v715
      %p720 = scmp.lt.s32.totalorder %s20, 1
      %s721 = scalar_select %p720, %s20, 1
      %s722 = smul.addr %s721, 4
      %s723 = scalar_lea.vmem %s6, %s722
      %p724 = scmp.lt.s32.totalorder %s20, 1
      %s725 = scalar_select %p724, %s20, 1
      %s726 = smul.addr %s725, 2
      %s727 = smul.addr %s726, 4
      %s728 = scalar_lea.vmem %s7, %s727
      %p729 = scmp.lt.s32.totalorder %s20, 1
      %s730 = scalar_select %p729, %s20, 1
      %s731 = smul.addr %s730, 2
      %s732 = smul.addr %s731, 4
      %s733 = scalar_lea.vmem %s8, %s732
      // Predicated region
      $region45: #{attention_pallas.2} parent=43 // pred_check
        %p734 = pneg %p179
      $region46: #{attention_pallas.2} parent=43 // pred_check_branch
        %736 = sbr.rel (%p734) target = $region48
      $region47: #{attention_pallas.2} parent=43 // pred_region
        _
      $region48: #{attention_pallas.2} parent=43 // pred_fallthru
        _
      // Predicated region
      $region49: #{attention_pallas.2} parent=43 // pred_check
        %p737 = pneg %p205
      $region50: #{attention_pallas.2} parent=43 // pred_check_branch
        %739 = sbr.rel (%p737) target = $region52
      $region51: #{attention_pallas.2} parent=43 // pred_region
        _
      $region52: #{attention_pallas.2} parent=43 // pred_fallthru
        _
      // Predicated region
      $region53: #{attention_pallas.2} parent=43 // pred_check
        %p740 = pneg %p231
      $region54: #{attention_pallas.2} parent=43 // pred_check_branch
        %742 = sbr.rel (%p740) target = $region56
      $region55: #{attention_pallas.2} parent=43 // pred_region
        _
      $region56: #{attention_pallas.2} parent=43 // pred_fallthru
        _
    $region44: #{attention_pallas.2} parent=5 // pred_fallthru
      _
    %p743 = scmp.le.s32.totalorder 2, %s15
    // Predicated region
    $region57: #{attention_pallas.2} parent=5 // pred_check
      %p744 = pneg %p743
    $region58: #{attention_pallas.2} parent=5 // pred_check_branch
      %746 = sbr.rel (%p744) target = $region60
    $region59: #{attention_pallas.2} parent=5 // pred_region
      %s747 = ssub.s32 %s15, 2
      // Predicated region
      $region61: #{attention_pallas.2} parent=59 // pred_check
        %p748 = pneg %p185
      $region62: #{attention_pallas.2} parent=59 // pred_check_branch
        %750 = sbr.rel (%p748) target = $region64
      $region63: #{attention_pallas.2} parent=59 // pred_region
        %p751 = scmp.lt.s32.totalorder %s21, 1
        %s752 = scalar_select %p751, %s21, 1
        %s753 = smul.addr %s752, 4
        %s754 = scalar_lea.vmem %s6, %s753
      $region64: #{attention_pallas.2} parent=59 // pred_fallthru
        _
      // Predicated region
      $region65: #{attention_pallas.2} parent=59 // pred_check
        %p755 = pneg %p211
      $region66: #{attention_pallas.2} parent=59 // pred_check_branch
        %757 = sbr.rel (%p755) target = $region68
      $region67: #{attention_pallas.2} parent=59 // pred_region
        %p758 = scmp.lt.s32.totalorder %s21, 1
        %s759 = scalar_select %p758, %s21, 1
        %s760 = smul.addr %s759, 2
        %s761 = smul.addr %s760, 4
        %s762 = scalar_lea.vmem %s7, %s761
      $region68: #{attention_pallas.2} parent=59 // pred_fallthru
        _
      // Predicated region
      $region69: #{attention_pallas.2} parent=59 // pred_check
        %p763 = pneg %p237
      $region70: #{attention_pallas.2} parent=59 // pred_check_branch
        %765 = sbr.rel (%p763) target = $region72
      $region71: #{attention_pallas.2} parent=59 // pred_region
        %p766 = scmp.lt.s32.totalorder %s21, 1
        %s767 = scalar_select %p766, %s21, 1
        %s768 = smul.addr %s767, 2
        %s769 = smul.addr %s768, 4
        %s770 = scalar_lea.vmem %s8, %s769
      $region72: #{attention_pallas.2} parent=59 // pred_fallthru
        _
    $region60: #{attention_pallas.2} parent=5 // pred_fallthru
      _
  $region6: #{attention_pallas.2} parent=0 // loop_footer
    %s19 = sadd.s32 1, %s15
  $region7: #{attention_pallas.2} parent=0 // loop_footer_branch
    %14 = sbr.rel target = $region3
  $region8: #{attention_pallas.2} parent=0 // loop_exit
    _

// kernel: attention_pallas.3
$region0: #{attention_pallas.3}
  #allocation0 [shape = 'u32[]', space=smem, size = 0x4, offset = 0x4, fixed_abs, tag = 'smem constant byte address 0x4 - core index']
  #allocation1 [shape = 'u32[144,128]{1,0:T(1,128)}', space=vmem, size = 0x12000, scoped, tag = 'internal scratch']
  %s0 = inlined_call_operand.vmem [shape: bf16[2,8,8,16], index: 0, kind: input, shape index: {}]
  %s1 = inlined_call_operand.vmem [shape: bf16[2,8,16,16], index: 1, kind: input, shape index: {}]
  %s2 = inlined_call_operand.vmem [shape: bf16[2,8,16,16], index: 2, kind: input, shape index: {}]
  %s3 = inlined_call_operand.vmem [shape: bf16[128,128], index: 3, kind: input, shape index: {}]
  %s4 = inlined_call_operand.vmem [shape: f32[1,128], index: 4, kind: input, shape index: {}]
  %s5 = inlined_call_operand.hbm [shape: f32[2,8,128], index: 5, kind: output, shape index: {}]
  %s6 = sld [smem:[#allocation0]]
  $region53: #{attention_pallas.3} parent=0
    _
  %s8 = ssub.s32 1, %s6
  %s9 = scalar_select 0, %s8, %s6
  $region1: #{attention_pallas.3} parent=0
    #allocation2 [shape = 'u8[8192]{0}', space=vmem, size = 0x2000, scoped, tag = 'output window, operand 0']
    #allocation3 [shape = 's32[2]{0}', space=sflag, size = 0x8, scoped, tag = 'scoped memory for attention_pallas.3']
    %10 = vsyncpa [#allocation3], 0
    %s11 = scalar_lea.sflag [#allocation3], 1
    %12 = vsyncpa %s11, 0
    loop: start=0, step=1, limit=4
    $region2: #{attention_pallas.3} parent=1 // loop_pre_header
      _
    $region3: #{attention_pallas.3} parent=1 // loop_header
      %s14 = sphi 0, %s18
      %p15 = scmp.ge.s32.totalorder %s14, 4
      %s24 = sphi 0, %s26
      %s27 = sphi 0, %s24
      %s28 = sphi 0, %s27
      %s44 = sphi 0, %s28
      %s50 = sphi 0, %s52
      %s53 = sphi 0, %s50
      %s54 = sphi 0, %s53
      %s70 = sphi 0, %s54
      %s76 = sphi 0, %s78
      %s79 = sphi 0, %s76
      %s80 = sphi 0, %s79
      %s96 = sphi 0, %s80
      %s100 = sphi 0, %s100
      %s102 = sphi 0, %s100
      %s103 = sphi 0, %s102
      %s117 = sphi 0, %s103
      %s121 = sphi 0, %s121
      %s123 = sphi 0, %s121
      %s124 = sphi 0, %s123
      %s138 = sphi 0, %s124
      %s144 = sphi 0, %s146
      %s147 = sphi 0, %s144
      %s148 = sphi 0, %s147
      %s164 = sphi 0, %s148
    $region4: #{attention_pallas.3} parent=1 // loop_header_branch
      %17 = sbr.rel (%p15) target = $region8
    $region5: #{attention_pallas.3} parent=1 // loop_body
      %s19 = ssub.s32 %s14, 1
      %s20 = ssub.s32 %s14, 2
      %s21 = sadd.s32 %s14, 1
      %s22 = ssub.s32 %s14, %s21
      %p23 = scmp.eq.s32.totalorder %s22, 0
      %s25 = sadd.s32 %s24, 1
      %s26 = scalar_select %p23, %s24, %s25
      %p29 = pneg %p23
      %p30 = scmp.eq.s32.totalorder %s14, 1
      %p31 = por %p29, %p30
      %p32 = scmp.ne.s32.totalorder %s24, %s27
      %p33 = scmp.eq.s32.totalorder %s14, 0
      %p34 = por %p32, %p33
      %p35 = scmp.ne.s32.totalorder %s24, %s27
      %p36 = scmp.eq.s32.totalorder %s19, 1
      %p37 = por %p35, %p36
      %p38 = scmp.ne.s32.totalorder %s27, %s28
      %p39 = scmp.eq.s32.totalorder %s19, 0
      %p40 = por %p38, %p39
      %p41 = scmp.ne.s32.totalorder %s27, %s28
      %p42 = scmp.eq.s32.totalorder %s20, 1
      %p43 = por %p41, %p42
      %p45 = scmp.ne.s32.totalorder %s28, %s44
      %p46 = scmp.eq.s32.totalorder %s20, 0
      %p47 = por %p45, %p46
      %s48 = ssub.s32 %s14, %s21
      %p49 = scmp.eq.s32.totalorder %s48, 0
      %s51 = sadd.s32 %s50, 1
      %s52 = scalar_select %p49, %s50, %s51
      %p55 = pneg %p49
      %p56 = scmp.eq.s32.totalorder %s14, 1
      %p57 = por %p55, %p56
      %p58 = scmp.ne.s32.totalorder %s50, %s53
      %p59 = scmp.eq.s32.totalorder %s14, 0
      %p60 = por %p58, %p59
      %p61 = scmp.ne.s32.totalorder %s50, %s53
      %p62 = scmp.eq.s32.totalorder %s19, 1
      %p63 = por %p61, %p62
      %p64 = scmp.ne.s32.totalorder %s53, %s54
      %p65 = scmp.eq.s32.totalorder %s19, 0
      %p66 = por %p64, %p65
      %p67 = scmp.ne.s32.totalorder %s53, %s54
      %p68 = scmp.eq.s32.totalorder %s20, 1
      %p69 = por %p67, %p68
      %p71 = scmp.ne.s32.totalorder %s54, %s70
      %p72 = scmp.eq.s32.totalorder %s20, 0
      %p73 = por %p71, %p72
      %s74 = ssub.s32 %s14, %s21
      %p75 = scmp.eq.s32.totalorder %s74, 0
      %s77 = sadd.s32 %s76, 1
      %s78 = scalar_select %p75, %s76, %s77
      %p81 = pneg %p75
      %p82 = scmp.eq.s32.totalorder %s14, 1
      %p83 = por %p81, %p82
      %p84 = scmp.ne.s32.totalorder %s76, %s79
      %p85 = scmp.eq.s32.totalorder %s14, 0
      %p86 = por %p84, %p85
      %p87 = scmp.ne.s32.totalorder %s76, %s79
      %p88 = scmp.eq.s32.totalorder %s19, 1
      %p89 = por %p87, %p88
      %p90 = scmp.ne.s32.totalorder %s79, %s80
      %p91 = scmp.eq.s32.totalorder %s19, 0
      %p92 = por %p90, %p91
      %p93 = scmp.ne.s32.totalorder %s79, %s80
      %p94 = scmp.eq.s32.totalorder %s20, 1
      %p95 = por %p93, %p94
      %p97 = scmp.ne.s32.totalorder %s80, %s96
      %p98 = scmp.eq.s32.totalorder %s20, 0
      %p99 = por %p97, %p98
      %s101 = sadd.s32 %s100, 1
      %p104 = scmp.eq.s32.totalorder %s14, 1
      %p105 = scmp.ne.s32.totalorder %s100, %s102
      %p106 = scmp.eq.s32.totalorder %s14, 0
      %p107 = por %p105, %p106
      %p108 = scmp.ne.s32.totalorder %s100, %s102
      %p109 = scmp.eq.s32.totalorder %s19, 1
      %p110 = por %p108, %p109
      %p111 = scmp.ne.s32.totalorder %s102, %s103
      %p112 = scmp.eq.s32.totalorder %s19, 0
      %p113 = por %p111, %p112
      %p114 = scmp.ne.s32.totalorder %s102, %s103
      %p115 = scmp.eq.s32.totalorder %s20, 1
      %p116 = por %p114, %p115
      %p118 = scmp.ne.s32.totalorder %s103, %s117
      %p119 = scmp.eq.s32.totalorder %s20, 0
      %p120 = por %p118, %p119
      %s122 = sadd.s32 %s121, 1
      %p125 = scmp.eq.s32.totalorder %s14, 1
      %p126 = scmp.ne.s32.totalorder %s121, %s123
      %p127 = scmp.eq.s32.totalorder %s14, 0
      %p128 = por %p126, %p127
      %p129 = scmp.ne.s32.totalorder %s121, %s123
      %p130 = scmp.eq.s32.totalorder %s19, 1
      %p131 = por %p129, %p130
      %p132 = scmp.ne.s32.totalorder %s123, %s124
      %p133 = scmp.eq.s32.totalorder %s19, 0
      %p134 = por %p132, %p133
      %p135 = scmp.ne.s32.totalorder %s123, %s124
      %p136 = scmp.eq.s32.totalorder %s20, 1
      %p137 = por %p135, %p136
      %p139 = scmp.ne.s32.totalorder %s124, %s138
      %p140 = scmp.eq.s32.totalorder %s20, 0
      %p141 = por %p139, %p140
      %s142 = ssub.s32 %s14, %s21
      %p143 = scmp.eq.s32.totalorder %s142, 0
      %s145 = sadd.s32 %s144, 1
      %s146 = scalar_select %p143, %s144, %s145
      %p149 = pneg %p143
      %p150 = scmp.eq.s32.totalorder %s14, 1
      %p151 = por %p149, %p150
      %p152 = scmp.ne.s32.totalorder %s144, %s147
      %p153 = scmp.eq.s32.totalorder %s14, 0
      %p154 = por %p152, %p153
      %p155 = scmp.ne.s32.totalorder %s144, %s147
      %p156 = scmp.eq.s32.totalorder %s19, 1
      %p157 = por %p155, %p156
      %p158 = scmp.ne.s32.totalorder %s147, %s148
      %p159 = scmp.eq.s32.totalorder %s19, 0
      %p160 = por %p158, %p159
      %p161 = scmp.ne.s32.totalorder %s147, %s148
      %p162 = scmp.eq.s32.totalorder %s20, 1
      %p163 = por %p161, %p162
      %p165 = scmp.ne.s32.totalorder %s148, %s164
      %p166 = scmp.eq.s32.totalorder %s20, 0
      %p167 = por %p165, %p166
      %p168 = scmp.le.s32.totalorder 1, %s14
      %p169 = scmp.lt.s32.totalorder %s14, 3
      %p170 = pnand %p168, %p169
      %p171 = pneg %p170
      // Predicated region
      $region9: #{attention_pallas.3} parent=5 // pred_check
        _
      $region10: #{attention_pallas.3} parent=5 // pred_check_branch
        %173 = sbr.rel (%p170) target = $region12
      $region11: #{attention_pallas.3} parent=5 // pred_region
        %s174 = ssub.s32 %s14, 1
        // Predicated region
        $region13: #{attention_pallas.3} parent=11 // pred_check
          %p175 = pneg %p113
        $region14: #{attention_pallas.3} parent=11 // pred_check_branch
          %177 = sbr.rel (%p175) target = $region16
        $region15: #{attention_pallas.3} parent=11 // pred_region
          _
        $region16: #{attention_pallas.3} parent=11 // pred_fallthru
          _
        // Predicated region
        $region17: #{attention_pallas.3} parent=11 // pred_check
          %p178 = pneg %p134
        $region18: #{attention_pallas.3} parent=11 // pred_check_branch
          %180 = sbr.rel (%p178) target = $region20
        $region19: #{attention_pallas.3} parent=11 // pred_region
          _
        $region20: #{attention_pallas.3} parent=11 // pred_fallthru
          _
      $region12: #{attention_pallas.3} parent=5 // pred_fallthru
        _
      %p181 = scmp.lt.s32.totalorder %s14, 2
      // Predicated region
      $region21: #{attention_pallas.3} parent=5 // pred_check
        %p182 = pneg %p181
      $region22: #{attention_pallas.3} parent=5 // pred_check_branch
        %184 = sbr.rel (%p182) target = $region24
      $region23: #{attention_pallas.3} parent=5 // pred_region
        // Predicated region
        $region25: #{attention_pallas.3} parent=23 // pred_check
          %p185 = pneg %p34
        $region26: #{attention_pallas.3} parent=23 // pred_check_branch
          %187 = sbr.rel (%p185) target = $region28
        $region27: #{attention_pallas.3} parent=23 // pred_region
          %p188 = scmp.lt.s32.totalorder %s14, 1
          %s189 = scalar_select %p188, %s14, 1
          %s190 = smul.addr %s189, 8
          %s191 = smul.addr %s190, 4
          %s192 = scalar_lea.vmem %s0, %s191
        $region28: #{attention_pallas.3} parent=23 // pred_fallthru
          _
        // Predicated region
        $region29: #{attention_pallas.3} parent=23 // pred_check
          %p193 = pneg %p60
        $region30: #{attention_pallas.3} parent=23 // pred_check_branch
          %195 = sbr.rel (%p193) target = $region32
        $region31: #{attention_pallas.3} parent=23 // pred_region
          %p196 = scmp.lt.s32.totalorder %s14, 1
          %s197 = scalar_select %p196, %s14, 1
          %s198 = smul.addr %s197, 16
          %s199 = smul.addr %s198, 4
          %s200 = scalar_lea.vmem %s1, %s199
        $region32: #{attention_pallas.3} parent=23 // pred_fallthru
          _
        // Predicated region
        $region33: #{attention_pallas.3} parent=23 // pred_check
          %p201 = pneg %p86
        $region34: #{attention_pallas.3} parent=23 // pred_check_branch
          %203 = sbr.rel (%p201) target = $region36
        $region35: #{attention_pallas.3} parent=23 // pred_region
          %p204 = scmp.lt.s32.totalorder %s14, 1
          %s205 = scalar_select %p204, %s14, 1
          %s206 = smul.addr %s205, 16
          %s207 = smul.addr %s206, 4
          %s208 = scalar_lea.vmem %s2, %s207
        $region36: #{attention_pallas.3} parent=23 // pred_fallthru
          _
      $region24: #{attention_pallas.3} parent=5 // pred_fallthru
        _
      %p209 = scmp.le.s32.totalorder 1, %s14
      %p210 = scmp.lt.s32.totalorder %s14, 3
      %p211 = pnand %p209, %p210
      %p212 = pneg %p211
      // Predicated region
      $region37: #{attention_pallas.3} parent=5 // pred_check
        _
      $region38: #{attention_pallas.3} parent=5 // pred_check_branch
        %214 = sbr.rel (%p211) target = $region40
      $region39: #{attention_pallas.3} parent=5 // pred_region
        %s215 = ssub.s32 %s14, 1
        %p216 = scmp.lt.s32.totalorder %s19, 1
        %s217 = scalar_select %p216, %s19, 1
        %s218 = smul.addr %s217, 8
        %s219 = smul.addr %s218, 4
        %s220 = scalar_lea.vmem %s0, %s219
        %p221 = pneg %p40
        %p222 = pneg %p37
        %p223 = scmp.lt.s32.totalorder %s19, 1
        %s224 = scalar_select %p223, %s19, 1
        %s225 = smul.addr %s224, 16
        %s226 = smul.addr %s225, 4
        %s227 = scalar_lea.vmem %s1, %s226
        %p228 = pneg %p66
        %p229 = pneg %p63
        %p230 = scmp.lt.s32.totalorder %s19, 1
        %s231 = scalar_select %p230, %s19, 1
        %s232 = smul.addr %s231, 16
        %s233 = smul.addr %s232, 4
        %s234 = scalar_lea.vmem %s2, %s233
        %p235 = pneg %p92
        %p236 = pneg %p89
        %p237 = pneg %p113
        %p238 = pneg %p110
        %p239 = pneg %p134
        %p240 = pneg %p131
        %p241 = pneg %p160
        %p242 = pneg %p157
        %s243 = sand.u32 %s147, 1
        %s244 = scalar_lea.sflag [#allocation3], %s243
        %s245 = sand.u32 %s147, 1
        %s246 = smul.addr %s245, 8
        %s247 = scalar_lea.vmem [#allocation2], %s246
        %p248 = scmp.lt.s32.totalorder %s19, 1
        %s249 = scalar_select %p248, %s19, 1
        %s250 = smul.addr %s249, 8
        %s251 = smul.addr %s250, 4
        %s252 = scalar_lea.vmem %s0, %s251
        %p253 = scmp.lt.s32.totalorder %s19, 1
        %s254 = scalar_select %p253, %s19, 1
        %s255 = smul.addr %s254, 16
        %s256 = smul.addr %s255, 4
        %s257 = scalar_lea.vmem %s1, %s256
        %p258 = scmp.lt.s32.totalorder %s19, 1
        %s259 = scalar_select %p258, %s19, 1
        %s260 = smul.addr %s259, 16
        %s261 = smul.addr %s260, 4
        %s262 = scalar_lea.vmem %s2, %s261
        %v264 = vld [vmem:[%s252] sm:$0xf]
        %v265 = vld [vmem:[%s252 + $0x4] sm:$0xf]
        %v266 = vld [vmem:[%s252 + $0x8] sm:$0xf]
        %v267 = vld [vmem:[%s252 + $0xc] sm:$0xf]
        %v268 = vld [vmem:[%s252 + $0x10] sm:$0xf]
        %v269 = vld [vmem:[%s252 + $0x14] sm:$0xf]
        %v270 = vld [vmem:[%s252 + $0x18] sm:$0xf]
        %v271 = vld [vmem:[%s252 + $0x1c] sm:$0xf]
        %v272 = vld [vmem:[%s257] sm:$0xf]
        %v273 = vld [vmem:[%s257 + $0x4] sm:$0xf]
        %v274 = vld [vmem:[%s257 + $0x8] sm:$0xf]
        %v275 = vld [vmem:[%s257 + $0xc] sm:$0xf]
        %v276 = vld [vmem:[%s257 + $0x10] sm:$0xf]
        %v277 = vld [vmem:[%s257 + $0x14] sm:$0xf]
        %v278 = vld [vmem:[%s257 + $0x18] sm:$0xf]
        %v279 = vld [vmem:[%s257 + $0x1c] sm:$0xf]
        %v280 = vld [vmem:[%s257 + $0x20] sm:$0xf]
        %v281 = vld [vmem:[%s257 + $0x24] sm:$0xf]
        %v282 = vld [vmem:[%s257 + $0x28] sm:$0xf]
        %v283 = vld [vmem:[%s257 + $0x2c] sm:$0xf]
        %v284 = vld [vmem:[%s257 + $0x30] sm:$0xf]
        %v285 = vld [vmem:[%s257 + $0x34] sm:$0xf]
        %v286 = vld [vmem:[%s257 + $0x38] sm:$0xf]
        %v287 = vld [vmem:[%s257 + $0x3c] sm:$0xf]
        %v288 = vld [vmem:[%s262] sm:$0xf]
        %v289 = vld [vmem:[%s262 + $0x4] sm:$0xf]
        %v290 = vld [vmem:[%s262 + $0x8] sm:$0xf]
        %v291 = vld [vmem:[%s262 + $0xc] sm:$0xf]
        %v292 = vld [vmem:[%s262 + $0x10] sm:$0xf]
        %v293 = vld [vmem:[%s262 + $0x14] sm:$0xf]
        %v294 = vld [vmem:[%s262 + $0x18] sm:$0xf]
        %v295 = vld [vmem:[%s262 + $0x1c] sm:$0xf]
        %v296 = vld [vmem:[%s262 + $0x20] sm:$0xf]
        %v297 = vld [vmem:[%s262 + $0x24] sm:$0xf]
        %v298 = vld [vmem:[%s262 + $0x28] sm:$0xf]
        %v299 = vld [vmem:[%s262 + $0x2c] sm:$0xf]
        %v300 = vld [vmem:[%s262 + $0x30] sm:$0xf]
        %v301 = vld [vmem:[%s262 + $0x34] sm:$0xf]
        %v302 = vld [vmem:[%s262 + $0x38] sm:$0xf]
        %v303 = vld [vmem:[%s262 + $0x3c] sm:$0xf]
        %v306 = vunpack.c.l.b16 %v272
        %v307 = vunpack.c.l.b16 %v273
        %v308 = vpack.c.b16 %v307, %v306
        %vm309 = vcmask 130048
        %v311 = vsel %vm309, %v264, 0
        %v314 = vsel %vm309, %v308, 0
        %316 = vmatprep.subr.bf16.mxu0 0
        %317 = vmatpush1.bf16.xpose.msra.mxu0 0
        %318 = vmatprep.subr.bf16.mxu0 0
        %319 = vmatpush1.bf16.xpose.msra.mxu0 0
        %320 = vmatprep.subr.bf16.mxu0 0
        %321 = vmatpush1.bf16.xpose.msra.mxu0 0
        %322 = vmatprep.subr.bf16.mxu0 0
        %323 = vmatpush1.bf16.xpose.msra.mxu0 0
        %324 = vmatprep.subr.bf16.mxu0 0
        %325 = vmatpush1.bf16.xpose.msra.mxu0 0
        %326 = vmatprep.subr.bf16.mxu0 0
        %327 = vmatpush1.bf16.xpose.msra.mxu0 0
        %328 = vmatprep.subr.bf16.mxu0 0
        %329 = vmatpush1.bf16.xpose.msra.mxu0 0
        %330 = vmatprep.subr.bf16.mxu0 0
        %331 = vmatpush1.bf16.xpose.msra.mxu0 %v314
        %332 = vmatprep.subr.bf16.mxu0 0
        %333 = vmatpush2.bf16.xpose.msra.mxu0 0
        %334 = vmatprep.subr.bf16.mxu0 0
        %335 = vmatpush2.bf16.xpose.msra.mxu0 0
        %336 = vmatprep.subr.bf16.mxu0 0
        %337 = vmatpush2.bf16.xpose.msra.mxu0 0
        %338 = vmatprep.subr.bf16.mxu0 0
        %339 = vmatpush2.bf16.xpose.msra.mxu0 0
        %340 = vmatprep.subr.bf16.mxu0 0
        %341 = vmatpush2.bf16.xpose.msra.mxu0 0
        %342 = vmatprep.subr.bf16.mxu0 0
        %343 = vmatpush2.bf16.xpose.msra.mxu0 0
        %344 = vmatprep.subr.bf16.mxu0 0
        %345 = vmatpush2.bf16.xpose.msra.mxu0 0
        %346 = vmatprep.subr.bf16.mxu0 0
        %347 = vmatpush2.bf16.xpose.msra.mxu0 0
        %348 = vmatprep.mubr.bf16.mxu0 0
        %349 = vmatmul.mubr.bf16.gmra.mxu0 %v311
        %v350 = vpop.f32.mrf.mxu0
        %v351 = vadd.f32 0.0, %v350
        %v352 = vpop.f32.mrf.mxu0
        %v353 = vpop.f32.mrf.mxu0
        %v354 = vpop.f32.mrf.mxu0
        %355 = vdwg.mxu0
        %v358 = vunpack.c.l.b16 %v274
        %v359 = vunpack.c.l.b16 %v275
        %v360 = vpack.c.b16 %v359, %v358
        %v362 = vsel %vm309, %v265, 0
        %v365 = vsel %vm309, %v360, 0
        %367 = vmatprep.subr.bf16.mxu0 0
        %368 = vmatpush1.bf16.xpose.msra.mxu0 0
        %369 = vmatprep.subr.bf16.mxu0 0
        %370 = vmatpush1.bf16.xpose.msra.mxu0 0
        %371 = vmatprep.subr.bf16.mxu0 0
        %372 = vmatpush1.bf16.xpose.msra.mxu0 0
        %373 = vmatprep.subr.bf16.mxu0 0
        %374 = vmatpush1.bf16.xpose.msra.mxu0 0
        %375 = vmatprep.subr.bf16.mxu0 0
        %376 = vmatpush1.bf16.xpose.msra.mxu0 0
        %377 = vmatprep.subr.bf16.mxu0 0
        %378 = vmatpush1.bf16.xpose.msra.mxu0 0
        %379 = vmatprep.subr.bf16.mxu0 0
        %380 = vmatpush1.bf16.xpose.msra.mxu0 0
        %381 = vmatprep.subr.bf16.mxu0 0
        %382 = vmatpush1.bf16.xpose.msra.mxu0 %v365
        %383 = vmatprep.subr.bf16.mxu0 0
        %384 = vmatpush2.bf16.xpose.msra.mxu0 0
        %385 = vmatprep.subr.bf16.mxu0 0
        %386 = vmatpush2.bf16.xpose.msra.mxu0 0
        %387 = vmatprep.subr.bf16.mxu0 0
        %388 = vmatpush2.bf16.xpose.msra.mxu0 0
        %389 = vmatprep.subr.bf16.mxu0 0
        %390 = vmatpush2.bf16.xpose.msra.mxu0 0
        %391 = vmatprep.subr.bf16.mxu0 0
        %392 = vmatpush2.bf16.xpose.msra.mxu0 0
        %393 = vmatprep.subr.bf16.mxu0 0
        %394 = vmatpush2.bf16.xpose.msra.mxu0 0
        %395 = vmatprep.subr.bf16.mxu0 0
        %396 = vmatpush2.bf16.xpose.msra.mxu0 0
        %397 = vmatprep.subr.bf16.mxu0 0
        %398 = vmatpush2.bf16.xpose.msra.mxu0 0
        %399 = vmatprep.mubr.bf16.mxu0 0
        %400 = vmatmul.mubr.bf16.gmra.mxu0 %v362
        %v401 = vpop.f32.mrf.mxu0
        %v402 = vadd.f32 0.0, %v401
        %v403 = vpop.f32.mrf.mxu0
        %v404 = vpop.f32.mrf.mxu0
        %v405 = vpop.f32.mrf.mxu0
        %406 = vdwg.mxu0
        %v409 = vunpack.c.l.b16 %v276
        %v410 = vunpack.c.l.b16 %v277
        %v411 = vpack.c.b16 %v410, %v409
        %v413 = vsel %vm309, %v266, 0
        %v416 = vsel %vm309, %v411, 0
        %418 = vmatprep.subr.bf16.mxu0 0
        %419 = vmatpush1.bf16.xpose.msra.mxu0 0
        %420 = vmatprep.subr.bf16.mxu0 0
        %421 = vmatpush1.bf16.xpose.msra.mxu0 0
        %422 = vmatprep.subr.bf16.mxu0 0
        %423 = vmatpush1.bf16.xpose.msra.mxu0 0
        %424 = vmatprep.subr.bf16.mxu0 0
        %425 = vmatpush1.bf16.xpose.msra.mxu0 0
        %426 = vmatprep.subr.bf16.mxu0 0
        %427 = vmatpush1.bf16.xpose.msra.mxu0 0
        %428 = vmatprep.subr.bf16.mxu0 0
        %429 = vmatpush1.bf16.xpose.msra.mxu0 0
        %430 = vmatprep.subr.bf16.mxu0 0
        %431 = vmatpush1.bf16.xpose.msra.mxu0 0
        %432 = vmatprep.subr.bf16.mxu0 0
        %433 = vmatpush1.bf16.xpose.msra.mxu0 %v416
        %434 = vmatprep.subr.bf16.mxu0 0
        %435 = vmatpush2.bf16.xpose.msra.mxu0 0
        %436 = vmatprep.subr.bf16.mxu0 0
        %437 = vmatpush2.bf16.xpose.msra.mxu0 0
        %438 = vmatprep.subr.bf16.mxu0 0
        %439 = vmatpush2.bf16.xpose.msra.mxu0 0
        %440 = vmatprep.subr.bf16.mxu0 0
        %441 = vmatpush2.bf16.xpose.msra.mxu0 0
        %442 = vmatprep.subr.bf16.mxu0 0
        %443 = vmatpush2.bf16.xpose.msra.mxu0 0
        %444 = vmatprep.subr.bf16.mxu0 0
        %445 = vmatpush2.bf16.xpose.msra.mxu0 0
        %446 = vmatprep.subr.bf16.mxu0 0
        %447 = vmatpush2.bf16.xpose.msra.mxu0 0
        %448 = vmatprep.subr.bf16.mxu0 0
        %449 = vmatpush2.bf16.xpose.msra.mxu0 0
        %450 = vmatprep.mubr.bf16.mxu0 0
        %451 = vmatmul.mubr.bf16.gmra.mxu0 %v413
        %v452 = vpop.f32.mrf.mxu0
        %v453 = vadd.f32 0.0, %v452
        %v454 = vpop.f32.mrf.mxu0
        %v455 = vpop.f32.mrf.mxu0
        %v456 = vpop.f32.mrf.mxu0
        %457 = vdwg.mxu0
        %v460 = vunpack.c.l.b16 %v278
        %v461 = vunpack.c.l.b16 %v279
        %v462 = vpack.c.b16 %v461, %v460
        %v464 = vsel %vm309, %v267, 0
        %v467 = vsel %vm309, %v462, 0
        %469 = vmatprep.subr.bf16.mxu0 0
        %470 = vmatpush1.bf16.xpose.msra.mxu0 0
        %471 = vmatprep.subr.bf16.mxu0 0
        %472 = vmatpush1.bf16.xpose.msra.mxu0 0
        %473 = vmatprep.subr.bf16.mxu0 0
        %474 = vmatpush1.bf16.xpose.msra.mxu0 0
        %475 = vmatprep.subr.bf16.mxu0 0
        %476 = vmatpush1.bf16.xpose.msra.mxu0 0
        %477 = vmatprep.subr.bf16.mxu0 0
        %478 = vmatpush1.bf16.xpose.msra.mxu0 0
        %479 = vmatprep.subr.bf16.mxu0 0
        %480 = vmatpush1.bf16.xpose.msra.mxu0 0
        %481 = vmatprep.subr.bf16.mxu0 0
        %482 = vmatpush1.bf16.xpose.msra.mxu0 0
        %483 = vmatprep.subr.bf16.mxu0 0
        %484 = vmatpush1.bf16.xpose.msra.mxu0 %v467
        %485 = vmatprep.subr.bf16.mxu0 0
        %486 = vmatpush2.bf16.xpose.msra.mxu0 0
        %487 = vmatprep.subr.bf16.mxu0 0
        %488 = vmatpush2.bf16.xpose.msra.mxu0 0
        %489 = vmatprep.subr.bf16.mxu0 0
        %490 = vmatpush2.bf16.xpose.msra.mxu0 0
        %491 = vmatprep.subr.bf16.mxu0 0
        %492 = vmatpush2.bf16.xpose.msra.mxu0 0
        %493 = vmatprep.subr.bf16.mxu0 0
        %494 = vmatpush2.bf16.xpose.msra.mxu0 0
        %495 = vmatprep.subr.bf16.mxu0 0
        %496 = vmatpush2.bf16.xpose.msra.mxu0 0
        %497 = vmatprep.subr.bf16.mxu0 0
        %498 = vmatpush2.bf16.xpose.msra.mxu0 0
        %499 = vmatprep.subr.bf16.mxu0 0
        %500 = vmatpush2.bf16.xpose.msra.mxu0 0
        %501 = vmatprep.mubr.bf16.mxu0 0
        %502 = vmatmul.mubr.bf16.gmra.mxu0 %v464
        %v503 = vpop.f32.mrf.mxu0
        %v504 = vadd.f32 0.0, %v503
        %v505 = vpop.f32.mrf.mxu0
        %v506 = vpop.f32.mrf.mxu0
        %v507 = vpop.f32.mrf.mxu0
        %508 = vdwg.mxu0
        %v511 = vunpack.c.l.b16 %v280
        %v512 = vunpack.c.l.b16 %v281
        %v513 = vpack.c.b16 %v512, %v511
        %v515 = vsel %vm309, %v268, 0
        %v518 = vsel %vm309, %v513, 0
        %520 = vmatprep.subr.bf16.mxu0 0
        %521 = vmatpush1.bf16.xpose.msra.mxu0 0
        %522 = vmatprep.subr.bf16.mxu0 0
        %523 = vmatpush1.bf16.xpose.msra.mxu0 0
        %524 = vmatprep.subr.bf16.mxu0 0
        %525 = vmatpush1.bf16.xpose.msra.mxu0 0
        %526 = vmatprep.subr.bf16.mxu0 0
        %527 = vmatpush1.bf16.xpose.msra.mxu0 0
        %528 = vmatprep.subr.bf16.mxu0 0
        %529 = vmatpush1.bf16.xpose.msra.mxu0 0
        %530 = vmatprep.subr.bf16.mxu0 0
        %531 = vmatpush1.bf16.xpose.msra.mxu0 0
        %532 = vmatprep.subr.bf16.mxu0 0
        %533 = vmatpush1.bf16.xpose.msra.mxu0 0
        %534 = vmatprep.subr.bf16.mxu0 0
        %535 = vmatpush1.bf16.xpose.msra.mxu0 %v518
        %536 = vmatprep.subr.bf16.mxu0 0
        %537 = vmatpush2.bf16.xpose.msra.mxu0 0
        %538 = vmatprep.subr.bf16.mxu0 0
        %539 = vmatpush2.bf16.xpose.msra.mxu0 0
        %540 = vmatprep.subr.bf16.mxu0 0
        %541 = vmatpush2.bf16.xpose.msra.mxu0 0
        %542 = vmatprep.subr.bf16.mxu0 0
        %543 = vmatpush2.bf16.xpose.msra.mxu0 0
        %544 = vmatprep.subr.bf16.mxu0 0
        %545 = vmatpush2.bf16.xpose.msra.mxu0 0
        %546 = vmatprep.subr.bf16.mxu0 0
        %547 = vmatpush2.bf16.xpose.msra.mxu0 0
        %548 = vmatprep.subr.bf16.mxu0 0
        %549 = vmatpush2.bf16.xpose.msra.mxu0 0
        %550 = vmatprep.subr.bf16.mxu0 0
        %551 = vmatpush2.bf16.xpose.msra.mxu0 0
        %552 = vmatprep.mubr.bf16.mxu0 0
        %553 = vmatmul.mubr.bf16.gmra.mxu0 %v515
        %v554 = vpop.f32.mrf.mxu0
        %v555 = vadd.f32 0.0, %v554
        %v556 = vpop.f32.mrf.mxu0
        %v557 = vpop.f32.mrf.mxu0
        %v558 = vpop.f32.mrf.mxu0
        %559 = vdwg.mxu0
        %v562 = vunpack.c.l.b16 %v282
        %v563 = vunpack.c.l.b16 %v283
        %v564 = vpack.c.b16 %v563, %v562
        %v566 = vsel %vm309, %v269, 0
        %v569 = vsel %vm309, %v564, 0
        %571 = vmatprep.subr.bf16.mxu0 0
        %572 = vmatpush1.bf16.xpose.msra.mxu0 0
        %573 = vmatprep.subr.bf16.mxu0 0
        %574 = vmatpush1.bf16.xpose.msra.mxu0 0
        %575 = vmatprep.subr.bf16.mxu0 0
        %576 = vmatpush1.bf16.xpose.msra.mxu0 0
        %577 = vmatprep.subr.bf16.mxu0 0
        %578 = vmatpush1.bf16.xpose.msra.mxu0 0
        %579 = vmatprep.subr.bf16.mxu0 0
        %580 = vmatpush1.bf16.xpose.msra.mxu0 0
        %581 = vmatprep.subr.bf16.mxu0 0
        %582 = vmatpush1.bf16.xpose.msra.mxu0 0
        %583 = vmatprep.subr.bf16.mxu0 0
        %584 = vmatpush1.bf16.xpose.msra.mxu0 0
        %585 = vmatprep.subr.bf16.mxu0 0
        %586 = vmatpush1.bf16.xpose.msra.mxu0 %v569
        %587 = vmatprep.subr.bf16.mxu0 0
        %588 = vmatpush2.bf16.xpose.msra.mxu0 0
        %589 = vmatprep.subr.bf16.mxu0 0
        %590 = vmatpush2.bf16.xpose.msra.mxu0 0
        %591 = vmatprep.subr.bf16.mxu0 0
        %592 = vmatpush2.bf16.xpose.msra.mxu0 0
        %593 = vmatprep.subr.bf16.mxu0 0
        %594 = vmatpush2.bf16.xpose.msra.mxu0 0
        %595 = vmatprep.subr.bf16.mxu0 0
        %596 = vmatpush2.bf16.xpose.msra.mxu0 0
        %597 = vmatprep.subr.bf16.mxu0 0
        %598 = vmatpush2.bf16.xpose.msra.mxu0 0
        %599 = vmatprep.subr.bf16.mxu0 0
        %600 = vmatpush2.bf16.xpose.msra.mxu0 0
        %601 = vmatprep.subr.bf16.mxu0 0
        %602 = vmatpush2.bf16.xpose.msra.mxu0 0
        %603 = vmatprep.mubr.bf16.mxu0 0
        %604 = vmatmul.mubr.bf16.gmra.mxu0 %v566
        %v605 = vpop.f32.mrf.mxu0
        %v606 = vadd.f32 0.0, %v605
        %v607 = vpop.f32.mrf.mxu0
        %v608 = vpop.f32.mrf.mxu0
        %v609 = vpop.f32.mrf.mxu0
        %610 = vdwg.mxu0
        %v613 = vunpack.c.l.b16 %v284
        %v614 = vunpack.c.l.b16 %v285
        %v615 = vpack.c.b16 %v614, %v613
        %v617 = vsel %vm309, %v270, 0
        %v620 = vsel %vm309, %v615, 0
        %622 = vmatprep.subr.bf16.mxu0 0
        %623 = vmatpush1.bf16.xpose.msra.mxu0 0
        %624 = vmatprep.subr.bf16.mxu0 0
        %625 = vmatpush1.bf16.xpose.msra.mxu0 0
        %626 = vmatprep.subr.bf16.mxu0 0
        %627 = vmatpush1.bf16.xpose.msra.mxu0 0
        %628 = vmatprep.subr.bf16.mxu0 0
        %629 = vmatpush1.bf16.xpose.msra.mxu0 0
        %630 = vmatprep.subr.bf16.mxu0 0
        %631 = vmatpush1.bf16.xpose.msra.mxu0 0
        %632 = vmatprep.subr.bf16.mxu0 0
        %633 = vmatpush1.bf16.xpose.msra.mxu0 0
        %634 = vmatprep.subr.bf16.mxu0 0
        %635 = vmatpush1.bf16.xpose.msra.mxu0 0
        %636 = vmatprep.subr.bf16.mxu0 0
        %637 = vmatpush1.bf16.xpose.msra.mxu0 %v620
        %638 = vmatprep.subr.bf16.mxu0 0
        %639 = vmatpush2.bf16.xpose.msra.mxu0 0
        %640 = vmatprep.subr.bf16.mxu0 0
        %641 = vmatpush2.bf16.xpose.msra.mxu0 0
        %642 = vmatprep.subr.bf16.mxu0 0
        %643 = vmatpush2.bf16.xpose.msra.mxu0 0
        %644 = vmatprep.subr.bf16.mxu0 0
        %645 = vmatpush2.bf16.xpose.msra.mxu0 0
        %646 = vmatprep.subr.bf16.mxu0 0
        %647 = vmatpush2.bf16.xpose.msra.mxu0 0
        %648 = vmatprep.subr.bf16.mxu0 0
        %649 = vmatpush2.bf16.xpose.msra.mxu0 0
        %650 = vmatprep.subr.bf16.mxu0 0
        %651 = vmatpush2.bf16.xpose.msra.mxu0 0
        %652 = vmatprep.subr.bf16.mxu0 0
        %653 = vmatpush2.bf16.xpose.msra.mxu0 0
        %654 = vmatprep.mubr.bf16.mxu0 0
        %655 = vmatmul.mubr.bf16.gmra.mxu0 %v617
        %v656 = vpop.f32.mrf.mxu0
        %v657 = vadd.f32 0.0, %v656
        %v658 = vpop.f32.mrf.mxu0
        %v659 = vpop.f32.mrf.mxu0
        %v660 = vpop.f32.mrf.mxu0
        %661 = vdwg.mxu0
        %v664 = vunpack.c.l.b16 %v286
        %v665 = vunpack.c.l.b16 %v287
        %v666 = vpack.c.b16 %v665, %v664
        %v668 = vsel %vm309, %v271, 0
        %v671 = vsel %vm309, %v666, 0
        %673 = vmatprep.subr.bf16.mxu0 0
        %674 = vmatpush1.bf16.xpose.msra.mxu0 0
        %675 = vmatprep.subr.bf16.mxu0 0
        %676 = vmatpush1.bf16.xpose.msra.mxu0 0
        %677 = vmatprep.subr.bf16.mxu0 0
        %678 = vmatpush1.bf16.xpose.msra.mxu0 0
        %679 = vmatprep.subr.bf16.mxu0 0
        %680 = vmatpush1.bf16.xpose.msra.mxu0 0
        %681 = vmatprep.subr.bf16.mxu0 0
        %682 = vmatpush1.bf16.xpose.msra.mxu0 0
        %683 = vmatprep.subr.bf16.mxu0 0
        %684 = vmatpush1.bf16.xpose.msra.mxu0 0
        %685 = vmatprep.subr.bf16.mxu0 0
        %686 = vmatpush1.bf16.xpose.msra.mxu0 0
        %687 = vmatprep.subr.bf16.mxu0 0
        %688 = vmatpush1.bf16.xpose.msra.mxu0 %v671
        %689 = vmatprep.subr.bf16.mxu0 0
        %690 = vmatpush2.bf16.xpose.msra.mxu0 0
        %691 = vmatprep.subr.bf16.mxu0 0
        %692 = vmatpush2.bf16.xpose.msra.mxu0 0
        %693 = vmatprep.subr.bf16.mxu0 0
        %694 = vmatpush2.bf16.xpose.msra.mxu0 0
        %695 = vmatprep.subr.bf16.mxu0 0
        %696 = vmatpush2.bf16.xpose.msra.mxu0 0
        %697 = vmatprep.subr.bf16.mxu0 0
        %698 = vmatpush2.bf16.xpose.msra.mxu0 0
        %699 = vmatprep.subr.bf16.mxu0 0
        %700 = vmatpush2.bf16.xpose.msra.mxu0 0
        %701 = vmatprep.subr.bf16.mxu0 0
        %702 = vmatpush2.bf16.xpose.msra.mxu0 0
        %703 = vmatprep.subr.bf16.mxu0 0
        %704 = vmatpush2.bf16.xpose.msra.mxu0 0
        %705 = vmatprep.mubr.bf16.mxu0 0
        %706 = vmatmul.mubr.bf16.gmra.mxu0 %v668
        %v707 = vpop.f32.mrf.mxu0
        %v708 = vadd.f32 0.0, %v707
        %v709 = vpop.f32.mrf.mxu0
        %v710 = vpop.f32.mrf.mxu0
        %v711 = vpop.f32.mrf.mxu0
        %712 = vdwg.mxu0
        %v713 = vsel %vm309, %v351, -inf
        %714 = vmax.xlane.f32.xlu0 %v713
        %v715 = vpop.xlane.xlu0 %714
        %v716 = vsel %vm309, %v402, -inf
        %717 = vmax.xlane.f32.xlu0 %v716
        %v718 = vpop.xlane.xlu0 %717
        %v719 = vsel %vm309, %v453, -inf
        %720 = vmax.xlane.f32.xlu0 %v719
        %v721 = vpop.xlane.xlu0 %720
        %v722 = vsel %vm309, %v504, -inf
        %723 = vmax.xlane.f32.xlu0 %v722
        %v724 = vpop.xlane.xlu0 %723
        %v725 = vsel %vm309, %v555, -inf
        %726 = vmax.xlane.f32.xlu0 %v725
        %v727 = vpop.xlane.xlu0 %726
        %v728 = vsel %vm309, %v606, -inf
        %729 = vmax.xlane.f32.xlu0 %v728
        %v730 = vpop.xlane.xlu0 %729
        %v731 = vsel %vm309, %v657, -inf
        %732 = vmax.xlane.f32.xlu0 %v731
        %v733 = vpop.xlane.xlu0 %732
        %v734 = vsel %vm309, %v708, -inf
        %735 = vmax.xlane.f32.xlu0 %v734
        %v736 = vpop.xlane.xlu0 %735
        %v737 = vsub.f32 %v351, %v715
        %v738 = vsub.f32 %v402, %v718
        %v739 = vsub.f32 %v453, %v721
        %v740 = vsub.f32 %v504, %v724
        %v741 = vsub.f32 %v555, %v727
        %v742 = vsub.f32 %v606, %v730
        %v743 = vsub.f32 %v657, %v733
        %v744 = vsub.f32 %v708, %v736
        %v745 = vmul.f32 %v737, 1.442695
        %v746 = vpow.pop %v745
        %v747 = vmul.f32 %v738, 1.442695
        %v748 = vpow.pop %v747
        %v749 = vmul.f32 %v739, 1.442695
        %v750 = vpow.pop %v749
        %v751 = vmul.f32 %v740, 1.442695
        %v752 = vpow.pop %v751
        %v753 = vmul.f32 %v741, 1.442695
        %v754 = vpow.pop %v753
        %v755 = vmul.f32 %v742, 1.442695
        %v756 = vpow.pop %v755
        %v757 = vmul.f32 %v743, 1.442695
        %v758 = vpow.pop %v757
        %v759 = vmul.f32 %v744, 1.442695
        %v760 = vpow.pop %v759
        %v761 = vsel %vm309, %v746, 0.0
        %762 = vadd.xlane.f32.xlu0 %v761
        %v763 = vpop.xlane.xlu0 %762
        %v764 = vsel %vm309, %v748, 0.0
        %765 = vadd.xlane.f32.xlu0 %v764
        %v766 = vpop.xlane.xlu0 %765
        %v767 = vsel %vm309, %v750, 0.0
        %768 = vadd.xlane.f32.xlu0 %v767
        %v769 = vpop.xlane.xlu0 %768
        %v770 = vsel %vm309, %v752, 0.0
        %771 = vadd.xlane.f32.xlu0 %v770
        %v772 = vpop.xlane.xlu0 %771
        %v773 = vsel %vm309, %v754, 0.0
        %774 = vadd.xlane.f32.xlu0 %v773
        %v775 = vpop.xlane.xlu0 %774
        %v776 = vsel %vm309, %v756, 0.0
        %777 = vadd.xlane.f32.xlu0 %v776
        %v778 = vpop.xlane.xlu0 %777
        %v779 = vsel %vm309, %v758, 0.0
        %780 = vadd.xlane.f32.xlu0 %v779
        %v781 = vpop.xlane.xlu0 %780
        %v782 = vsel %vm309, %v760, 0.0
        %783 = vadd.xlane.f32.xlu0 %v782
        %v784 = vpop.xlane.xlu0 %783
        %v785 = vrcp.pop %v763
        %v786 = vrcp.pop %v766
        %v787 = vrcp.pop %v769
        %v788 = vrcp.pop %v772
        %v789 = vrcp.pop %v775
        %v790 = vrcp.pop %v778
        %v791 = vrcp.pop %v781
        %v792 = vrcp.pop %v784
        %v793 = vmul.f32 %v746, %v785
        %v794 = vmul.f32 %v748, %v786
        %v795 = vmul.f32 %v750, %v787
        %v796 = vmul.f32 %v752, %v788
        %v797 = vmul.f32 %v754, %v789
        %v798 = vmul.f32 %v756, %v790
        %v799 = vmul.f32 %v758, %v791
        %v800 = vmul.f32 %v760, %v792
        %v801 = vpack.c.bf16 %v793, %v793
        %v802 = vpack.c.bf16 %v794, %v794
        %v803 = vpack.c.bf16 %v795, %v795
        %v804 = vpack.c.bf16 %v796, %v796
        %v805 = vpack.c.bf16 %v797, %v797
        %v806 = vpack.c.bf16 %v798, %v798
        %v807 = vpack.c.bf16 %v799, %v799
        %v808 = vpack.c.bf16 %v800, %v800
        %v811 = vunpack.c.l.b16 %v288
        %v812 = vunpack.c.l.b16 %v289
        %v813 = vpack.c.b16 %v812, %v811
        %v816 = vsel %vm309, %v801, 0
        %818 = vmatprep.subr.bf16.mxu0 0
        %819 = vmatpush1.bf16.msra.mxu0 0
        %820 = vmatprep.subr.bf16.mxu0 0
        %821 = vmatpush1.bf16.msra.mxu0 0
        %822 = vmatprep.subr.bf16.mxu0 0
        %823 = vmatpush1.bf16.msra.mxu0 0
        %824 = vmatprep.subr.bf16.mxu0 0
        %825 = vmatpush1.bf16.msra.mxu0 0
        %826 = vmatprep.subr.bf16.mxu0 0
        %827 = vmatpush1.bf16.msra.mxu0 0
        %828 = vmatprep.subr.bf16.mxu0 0
        %829 = vmatpush1.bf16.msra.mxu0 0
        %830 = vmatprep.subr.bf16.mxu0 0
        %831 = vmatpush1.bf16.msra.mxu0 0
        %832 = vmatprep.subr.bf16.mxu0 0
        %833 = vmatpush1.bf16.msra.mxu0 %v813
        %834 = vmatprep.subr.bf16.mxu0 0
        %835 = vmatpush2.bf16.msra.mxu0 0
        %836 = vmatprep.subr.bf16.mxu0 0
        %837 = vmatpush2.bf16.msra.mxu0 0
        %838 = vmatprep.subr.bf16.mxu0 0
        %839 = vmatpush2.bf16.msra.mxu0 0
        %840 = vmatprep.subr.bf16.mxu0 0
        %841 = vmatpush2.bf16.msra.mxu0 0
        %842 = vmatprep.subr.bf16.mxu0 0
        %843 = vmatpush2.bf16.msra.mxu0 0
        %844 = vmatprep.subr.bf16.mxu0 0
        %845 = vmatpush2.bf16.msra.mxu0 0
        %846 = vmatprep.subr.bf16.mxu0 0
        %847 = vmatpush2.bf16.msra.mxu0 0
        %848 = vmatprep.subr.bf16.mxu0 0
        %849 = vmatpush2.bf16.msra.mxu0 0
        %850 = vmatprep.mubr.bf16.mxu0 0
        %851 = vmatmul.mubr.bf16.gmra.mxu0 %v816
        %v852 = vpop.f32.mrf.mxu0
        %v853 = vadd.f32 0.0, %v852
        %v854 = vpop.f32.mrf.mxu0
        %v855 = vpop.f32.mrf.mxu0
        %v856 = vpop.f32.mrf.mxu0
        %857 = vdwg.mxu0
        %v860 = vunpack.c.l.b16 %v290
        %v861 = vunpack.c.l.b16 %v291
        %v862 = vpack.c.b16 %v861, %v860
        %v865 = vsel %vm309, %v802, 0
        %867 = vmatprep.subr.bf16.mxu0 0
        %868 = vmatpush1.bf16.msra.mxu0 0
        %869 = vmatprep.subr.bf16.mxu0 0
        %870 = vmatpush1.bf16.msra.mxu0 0
        %871 = vmatprep.subr.bf16.mxu0 0
        %872 = vmatpush1.bf16.msra.mxu0 0
        %873 = vmatprep.subr.bf16.mxu0 0
        %874 = vmatpush1.bf16.msra.mxu0 0
        %875 = vmatprep.subr.bf16.mxu0 0
        %876 = vmatpush1.bf16.msra.mxu0 0
        %877 = vmatprep.subr.bf16.mxu0 0
        %878 = vmatpush1.bf16.msra.mxu0 0
        %879 = vmatprep.subr.bf16.mxu0 0
        %880 = vmatpush1.bf16.msra.mxu0 0
        %881 = vmatprep.subr.bf16.mxu0 0
        %882 = vmatpush1.bf16.msra.mxu0 %v862
        %883 = vmatprep.subr.bf16.mxu0 0
        %884 = vmatpush2.bf16.msra.mxu0 0
        %885 = vmatprep.subr.bf16.mxu0 0
        %886 = vmatpush2.bf16.msra.mxu0 0
        %887 = vmatprep.subr.bf16.mxu0 0
        %888 = vmatpush2.bf16.msra.mxu0 0
        %889 = vmatprep.subr.bf16.mxu0 0
        %890 = vmatpush2.bf16.msra.mxu0 0
        %891 = vmatprep.subr.bf16.mxu0 0
        %892 = vmatpush2.bf16.msra.mxu0 0
        %893 = vmatprep.subr.bf16.mxu0 0
        %894 = vmatpush2.bf16.msra.mxu0 0
        %895 = vmatprep.subr.bf16.mxu0 0
        %896 = vmatpush2.bf16.msra.mxu0 0
        %897 = vmatprep.subr.bf16.mxu0 0
        %898 = vmatpush2.bf16.msra.mxu0 0
        %899 = vmatprep.mubr.bf16.mxu0 0
        %900 = vmatmul.mubr.bf16.gmra.mxu0 %v865
        %v901 = vpop.f32.mrf.mxu0
        %v902 = vadd.f32 0.0, %v901
        %v903 = vpop.f32.mrf.mxu0
        %v904 = vpop.f32.mrf.mxu0
        %v905 = vpop.f32.mrf.mxu0
        %906 = vdwg.mxu0
        %v909 = vunpack.c.l.b16 %v292
        %v910 = vunpack.c.l.b16 %v293
        %v911 = vpack.c.b16 %v910, %v909
        %v914 = vsel %vm309, %v803, 0
        %916 = vmatprep.subr.bf16.mxu0 0
        %917 = vmatpush1.bf16.msra.mxu0 0
        %918 = vmatprep.subr.bf16.mxu0 0
        %919 = vmatpush1.bf16.msra.mxu0 0
        %920 = vmatprep.subr.bf16.mxu0 0
        %921 = vmatpush1.bf16.msra.mxu0 0
        %922 = vmatprep.subr.bf16.mxu0 0
        %923 = vmatpush1.bf16.msra.mxu0 0
        %924 = vmatprep.subr.bf16.mxu0 0
        %925 = vmatpush1.bf16.msra.mxu0 0
        %926 = vmatprep.subr.bf16.mxu0 0
        %927 = vmatpush1.bf16.msra.mxu0 0
        %928 = vmatprep.subr.bf16.mxu0 0
        %929 = vmatpush1.bf16.msra.mxu0 0
        %930 = vmatprep.subr.bf16.mxu0 0
        %931 = vmatpush1.bf16.msra.mxu0 %v911
        %932 = vmatprep.subr.bf16.mxu0 0
        %933 = vmatpush2.bf16.msra.mxu0 0
        %934 = vmatprep.subr.bf16.mxu0 0
        %935 = vmatpush2.bf16.msra.mxu0 0
        %936 = vmatprep.subr.bf16.mxu0 0
        %937 = vmatpush2.bf16.msra.mxu0 0
        %938 = vmatprep.subr.bf16.mxu0 0
        %939 = vmatpush2.bf16.msra.mxu0 0
        %940 = vmatprep.subr.bf16.mxu0 0
        %941 = vmatpush2.bf16.msra.mxu0 0
        %942 = vmatprep.subr.bf16.mxu0 0
        %943 = vmatpush2.bf16.msra.mxu0 0
        %944 = vmatprep.subr.bf16.mxu0 0
        %945 = vmatpush2.bf16.msra.mxu0 0
        %946 = vmatprep.subr.bf16.mxu0 0
        %947 = vmatpush2.bf16.msra.mxu0 0
        %948 = vmatprep.mubr.bf16.mxu0 0
        %949 = vmatmul.mubr.bf16.gmra.mxu0 %v914
        %v950 = vpop.f32.mrf.mxu0
        %v951 = vadd.f32 0.0, %v950
        %v952 = vpop.f32.mrf.mxu0
        %v953 = vpop.f32.mrf.mxu0
        %v954 = vpop.f32.mrf.mxu0
        %955 = vdwg.mxu0
        %v958 = vunpack.c.l.b16 %v294
        %v959 = vunpack.c.l.b16 %v295
        %v960 = vpack.c.b16 %v959, %v958
        %v963 = vsel %vm309, %v804, 0
        %965 = vmatprep.subr.bf16.mxu0 0
        %966 = vmatpush1.bf16.msra.mxu0 0
        %967 = vmatprep.subr.bf16.mxu0 0
        %968 = vmatpush1.bf16.msra.mxu0 0
        %969 = vmatprep.subr.bf16.mxu0 0
        %970 = vmatpush1.bf16.msra.mxu0 0
        %971 = vmatprep.subr.bf16.mxu0 0
        %972 = vmatpush1.bf16.msra.mxu0 0
        %973 = vmatprep.subr.bf16.mxu0 0
        %974 = vmatpush1.bf16.msra.mxu0 0
        %975 = vmatprep.subr.bf16.mxu0 0
        %976 = vmatpush1.bf16.msra.mxu0 0
        %977 = vmatprep.subr.bf16.mxu0 0
        %978 = vmatpush1.bf16.msra.mxu0 0
        %979 = vmatprep.subr.bf16.mxu0 0
        %980 = vmatpush1.bf16.msra.mxu0 %v960
        %981 = vmatprep.subr.bf16.mxu0 0
        %982 = vmatpush2.bf16.msra.mxu0 0
        %983 = vmatprep.subr.bf16.mxu0 0
        %984 = vmatpush2.bf16.msra.mxu0 0
        %985 = vmatprep.subr.bf16.mxu0 0
        %986 = vmatpush2.bf16.msra.mxu0 0
        %987 = vmatprep.subr.bf16.mxu0 0
        %988 = vmatpush2.bf16.msra.mxu0 0
        %989 = vmatprep.subr.bf16.mxu0 0
        %990 = vmatpush2.bf16.msra.mxu0 0
        %991 = vmatprep.subr.bf16.mxu0 0
        %992 = vmatpush2.bf16.msra.mxu0 0
        %993 = vmatprep.subr.bf16.mxu0 0
        %994 = vmatpush2.bf16.msra.mxu0 0
        %995 = vmatprep.subr.bf16.mxu0 0
        %996 = vmatpush2.bf16.msra.mxu0 0
        %997 = vmatprep.mubr.bf16.mxu0 0
        %998 = vmatmul.mubr.bf16.gmra.mxu0 %v963
        %v999 = vpop.f32.mrf.mxu0
        %v1000 = vadd.f32 0.0, %v999
        %v1001 = vpop.f32.mrf.mxu0
        %v1002 = vpop.f32.mrf.mxu0
        %v1003 = vpop.f32.mrf.mxu0
        %1004 = vdwg.mxu0
        %v1007 = vunpack.c.l.b16 %v296
        %v1008 = vunpack.c.l.b16 %v297
        %v1009 = vpack.c.b16 %v1008, %v1007
        %v1012 = vsel %vm309, %v805, 0
        %1014 = vmatprep.subr.bf16.mxu0 0
        %1015 = vmatpush1.bf16.msra.mxu0 0
        %1016 = vmatprep.subr.bf16.mxu0 0
        %1017 = vmatpush1.bf16.msra.mxu0 0
        %1018 = vmatprep.subr.bf16.mxu0 0
        %1019 = vmatpush1.bf16.msra.mxu0 0
        %1020 = vmatprep.subr.bf16.mxu0 0
        %1021 = vmatpush1.bf16.msra.mxu0 0
        %1022 = vmatprep.subr.bf16.mxu0 0
        %1023 = vmatpush1.bf16.msra.mxu0 0
        %1024 = vmatprep.subr.bf16.mxu0 0
        %1025 = vmatpush1.bf16.msra.mxu0 0
        %1026 = vmatprep.subr.bf16.mxu0 0
        %1027 = vmatpush1.bf16.msra.mxu0 0
        %1028 = vmatprep.subr.bf16.mxu0 0
        %1029 = vmatpush1.bf16.msra.mxu0 %v1009
        %1030 = vmatprep.subr.bf16.mxu0 0
        %1031 = vmatpush2.bf16.msra.mxu0 0
        %1032 = vmatprep.subr.bf16.mxu0 0
        %1033 = vmatpush2.bf16.msra.mxu0 0
        %1034 = vmatprep.subr.bf16.mxu0 0
        %1035 = vmatpush2.bf16.msra.mxu0 0
        %1036 = vmatprep.subr.bf16.mxu0 0
        %1037 = vmatpush2.bf16.msra.mxu0 0
        %1038 = vmatprep.subr.bf16.mxu0 0
        %1039 = vmatpush2.bf16.msra.mxu0 0
        %1040 = vmatprep.subr.bf16.mxu0 0
        %1041 = vmatpush2.bf16.msra.mxu0 0
        %1042 = vmatprep.subr.bf16.mxu0 0
        %1043 = vmatpush2.bf16.msra.mxu0 0
        %1044 = vmatprep.subr.bf16.mxu0 0
        %1045 = vmatpush2.bf16.msra.mxu0 0
        %1046 = vmatprep.mubr.bf16.mxu0 0
        %1047 = vmatmul.mubr.bf16.gmra.mxu0 %v1012
        %v1048 = vpop.f32.mrf.mxu0
        %v1049 = vadd.f32 0.0, %v1048
        %v1050 = vpop.f32.mrf.mxu0
        %v1051 = vpop.f32.mrf.mxu0
        %v1052 = vpop.f32.mrf.mxu0
        %1053 = vdwg.mxu0
        %v1056 = vunpack.c.l.b16 %v298
        %v1057 = vunpack.c.l.b16 %v299
        %v1058 = vpack.c.b16 %v1057, %v1056
        %v1061 = vsel %vm309, %v806, 0
        %1063 = vmatprep.subr.bf16.mxu0 0
        %1064 = vmatpush1.bf16.msra.mxu0 0
        %1065 = vmatprep.subr.bf16.mxu0 0
        %1066 = vmatpush1.bf16.msra.mxu0 0
        %1067 = vmatprep.subr.bf16.mxu0 0
        %1068 = vmatpush1.bf16.msra.mxu0 0
        %1069 = vmatprep.subr.bf16.mxu0 0
        %1070 = vmatpush1.bf16.msra.mxu0 0
        %1071 = vmatprep.subr.bf16.mxu0 0
        %1072 = vmatpush1.bf16.msra.mxu0 0
        %1073 = vmatprep.subr.bf16.mxu0 0
        %1074 = vmatpush1.bf16.msra.mxu0 0
        %1075 = vmatprep.subr.bf16.mxu0 0
        %1076 = vmatpush1.bf16.msra.mxu0 0
        %1077 = vmatprep.subr.bf16.mxu0 0
        %1078 = vmatpush1.bf16.msra.mxu0 %v1058
        %1079 = vmatprep.subr.bf16.mxu0 0
        %1080 = vmatpush2.bf16.msra.mxu0 0
        %1081 = vmatprep.subr.bf16.mxu0 0
        %1082 = vmatpush2.bf16.msra.mxu0 0
        %1083 = vmatprep.subr.bf16.mxu0 0
        %1084 = vmatpush2.bf16.msra.mxu0 0
        %1085 = vmatprep.subr.bf16.mxu0 0
        %1086 = vmatpush2.bf16.msra.mxu0 0
        %1087 = vmatprep.subr.bf16.mxu0 0
        %1088 = vmatpush2.bf16.msra.mxu0 0
        %1089 = vmatprep.subr.bf16.mxu0 0
        %1090 = vmatpush2.bf16.msra.mxu0 0
        %1091 = vmatprep.subr.bf16.mxu0 0
        %1092 = vmatpush2.bf16.msra.mxu0 0
        %1093 = vmatprep.subr.bf16.mxu0 0
        %1094 = vmatpush2.bf16.msra.mxu0 0
        %1095 = vmatprep.mubr.bf16.mxu0 0
        %1096 = vmatmul.mubr.bf16.gmra.mxu0 %v1061
        %v1097 = vpop.f32.mrf.mxu0
        %v1098 = vadd.f32 0.0, %v1097
        %v1099 = vpop.f32.mrf.mxu0
        %v1100 = vpop.f32.mrf.mxu0
        %v1101 = vpop.f32.mrf.mxu0
        %1102 = vdwg.mxu0
        %v1105 = vunpack.c.l.b16 %v300
        %v1106 = vunpack.c.l.b16 %v301
        %v1107 = vpack.c.b16 %v1106, %v1105
        %v1110 = vsel %vm309, %v807, 0
        %1112 = vmatprep.subr.bf16.mxu0 0
        %1113 = vmatpush1.bf16.msra.mxu0 0
        %1114 = vmatprep.subr.bf16.mxu0 0
        %1115 = vmatpush1.bf16.msra.mxu0 0
        %1116 = vmatprep.subr.bf16.mxu0 0
        %1117 = vmatpush1.bf16.msra.mxu0 0
        %1118 = vmatprep.subr.bf16.mxu0 0
        %1119 = vmatpush1.bf16.msra.mxu0 0
        %1120 = vmatprep.subr.bf16.mxu0 0
        %1121 = vmatpush1.bf16.msra.mxu0 0
        %1122 = vmatprep.subr.bf16.mxu0 0
        %1123 = vmatpush1.bf16.msra.mxu0 0
        %1124 = vmatprep.subr.bf16.mxu0 0
        %1125 = vmatpush1.bf16.msra.mxu0 0
        %1126 = vmatprep.subr.bf16.mxu0 0
        %1127 = vmatpush1.bf16.msra.mxu0 %v1107
        %1128 = vmatprep.subr.bf16.mxu0 0
        %1129 = vmatpush2.bf16.msra.mxu0 0
        %1130 = vmatprep.subr.bf16.mxu0 0
        %1131 = vmatpush2.bf16.msra.mxu0 0
        %1132 = vmatprep.subr.bf16.mxu0 0
        %1133 = vmatpush2.bf16.msra.mxu0 0
        %1134 = vmatprep.subr.bf16.mxu0 0
        %1135 = vmatpush2.bf16.msra.mxu0 0
        %1136 = vmatprep.subr.bf16.mxu0 0
        %1137 = vmatpush2.bf16.msra.mxu0 0
        %1138 = vmatprep.subr.bf16.mxu0 0
        %1139 = vmatpush2.bf16.msra.mxu0 0
        %1140 = vmatprep.subr.bf16.mxu0 0
        %1141 = vmatpush2.bf16.msra.mxu0 0
        %1142 = vmatprep.subr.bf16.mxu0 0
        %1143 = vmatpush2.bf16.msra.mxu0 0
        %1144 = vmatprep.mubr.bf16.mxu0 0
        %1145 = vmatmul.mubr.bf16.gmra.mxu0 %v1110
        %v1146 = vpop.f32.mrf.mxu0
        %v1147 = vadd.f32 0.0, %v1146
        %v1148 = vpop.f32.mrf.mxu0
        %v1149 = vpop.f32.mrf.mxu0
        %v1150 = vpop.f32.mrf.mxu0
        %1151 = vdwg.mxu0
        %v1154 = vunpack.c.l.b16 %v302
        %v1155 = vunpack.c.l.b16 %v303
        %v1156 = vpack.c.b16 %v1155, %v1154
        %v1159 = vsel %vm309, %v808, 0
        %1161 = vmatprep.subr.bf16.mxu0 0
        %1162 = vmatpush1.bf16.msra.mxu0 0
        %1163 = vmatprep.subr.bf16.mxu0 0
        %1164 = vmatpush1.bf16.msra.mxu0 0
        %1165 = vmatprep.subr.bf16.mxu0 0
        %1166 = vmatpush1.bf16.msra.mxu0 0
        %1167 = vmatprep.subr.bf16.mxu0 0
        %1168 = vmatpush1.bf16.msra.mxu0 0
        %1169 = vmatprep.subr.bf16.mxu0 0
        %1170 = vmatpush1.bf16.msra.mxu0 0
        %1171 = vmatprep.subr.bf16.mxu0 0
        %1172 = vmatpush1.bf16.msra.mxu0 0
        %1173 = vmatprep.subr.bf16.mxu0 0
        %1174 = vmatpush1.bf16.msra.mxu0 0
        %1175 = vmatprep.subr.bf16.mxu0 0
        %1176 = vmatpush1.bf16.msra.mxu0 %v1156
        %1177 = vmatprep.subr.bf16.mxu0 0
        %1178 = vmatpush2.bf16.msra.mxu0 0
        %1179 = vmatprep.subr.bf16.mxu0 0
        %1180 = vmatpush2.bf16.msra.mxu0 0
        %1181 = vmatprep.subr.bf16.mxu0 0
        %1182 = vmatpush2.bf16.msra.mxu0 0
        %1183 = vmatprep.subr.bf16.mxu0 0
        %1184 = vmatpush2.bf16.msra.mxu0 0
        %1185 = vmatprep.subr.bf16.mxu0 0
        %1186 = vmatpush2.bf16.msra.mxu0 0
        %1187 = vmatprep.subr.bf16.mxu0 0
        %1188 = vmatpush2.bf16.msra.mxu0 0
        %1189 = vmatprep.subr.bf16.mxu0 0
        %1190 = vmatpush2.bf16.msra.mxu0 0
        %1191 = vmatprep.subr.bf16.mxu0 0
        %1192 = vmatpush2.bf16.msra.mxu0 0
        %1193 = vmatprep.mubr.bf16.mxu0 0
        %1194 = vmatmul.mubr.bf16.gmra.mxu0 %v1159
        %v1195 = vpop.f32.mrf.mxu0
        %v1196 = vadd.f32 0.0, %v1195
        %v1197 = vpop.f32.mrf.mxu0
        %v1198 = vpop.f32.mrf.mxu0
        %v1199 = vpop.f32.mrf.mxu0
        %1200 = vdwg.mxu0
        %v1201 = vpack.c.bf16 %v853, %v853
        %v1202 = vld [vmem:[%s3] sm:$0xf]
        %v1203 = vld [vmem:[%s3 + $0x4] sm:$0xf]
        %v1204 = vpack.c.bf16 %v902, %v902
        %v1205 = vld [vmem:[%s3 + $0x8] sm:$0xf]
        %v1206 = vld [vmem:[%s3 + $0xc] sm:$0xf]
        %v1209 = vunpack.c.l.b16 %v1205
        %v1210 = vunpack.c.l.b16 %v1206
        %v1211 = vpack.c.b16 %v1210, %v1209
        %v1214 = vsel %vm309, %v1204, 0
        %1216 = vmatprep.subr.bf16.mxu0 0
        %1217 = vmatpush1.bf16.msra.mxu0 0
        %1218 = vmatprep.subr.bf16.mxu0 0
        %1219 = vmatpush1.bf16.msra.mxu0 0
        %1220 = vmatprep.subr.bf16.mxu0 0
        %1221 = vmatpush1.bf16.msra.mxu0 0
        %1222 = vmatprep.subr.bf16.mxu0 0
        %1223 = vmatpush1.bf16.msra.mxu0 0
        %1224 = vmatprep.subr.bf16.mxu0 0
        %1225 = vmatpush1.bf16.msra.mxu0 0
        %1226 = vmatprep.subr.bf16.mxu0 0
        %1227 = vmatpush1.bf16.msra.mxu0 0
        %1228 = vmatprep.subr.bf16.mxu0 0
        %1229 = vmatpush1.bf16.msra.mxu0 0
        %1230 = vmatprep.subr.bf16.mxu0 0
        %1231 = vmatpush1.bf16.msra.mxu0 %v1211
        %1232 = vmatprep.subr.bf16.mxu0 0
        %1233 = vmatpush2.bf16.msra.mxu0 0
        %1234 = vmatprep.subr.bf16.mxu0 0
        %1235 = vmatpush2.bf16.msra.mxu0 0
        %1236 = vmatprep.subr.bf16.mxu0 0
        %1237 = vmatpush2.bf16.msra.mxu0 0
        %1238 = vmatprep.subr.bf16.mxu0 0
        %1239 = vmatpush2.bf16.msra.mxu0 0
        %1240 = vmatprep.subr.bf16.mxu0 0
        %1241 = vmatpush2.bf16.msra.mxu0 0
        %1242 = vmatprep.subr.bf16.mxu0 0
        %1243 = vmatpush2.bf16.msra.mxu0 0
        %1244 = vmatprep.subr.bf16.mxu0 0
        %1245 = vmatpush2.bf16.msra.mxu0 0
        %1246 = vmatprep.subr.bf16.mxu0 0
        %1247 = vmatpush2.bf16.msra.mxu0 0
        %1248 = vmatprep.mubr.bf16.mxu0 0
        %1249 = vmatmul.mubr.bf16.gmra.mxu0 %v1214
        %v1250 = vpop.f32.mrf.mxu0
        %v1251 = vadd.f32 0.0, %v1250
        %v1252 = vpop.f32.mrf.mxu0
        %v1253 = vpop.f32.mrf.mxu0
        %v1254 = vpop.f32.mrf.mxu0
        %1255 = vdwg.mxu0
        %v1258 = vunpack.c.l.b16 %v1202
        %v1259 = vunpack.c.l.b16 %v1203
        %v1260 = vpack.c.b16 %v1259, %v1258
        %v1263 = vsel %vm309, %v1201, 0
        %1265 = vmatprep.subr.bf16.mxu0 0
        %1266 = vmatpush1.bf16.msra.mxu0 0
        %1267 = vmatprep.subr.bf16.mxu0 0
        %1268 = vmatpush1.bf16.msra.mxu0 0
        %1269 = vmatprep.subr.bf16.mxu0 0
        %1270 = vmatpush1.bf16.msra.mxu0 0
        %1271 = vmatprep.subr.bf16.mxu0 0
        %1272 = vmatpush1.bf16.msra.mxu0 0
        %1273 = vmatprep.subr.bf16.mxu0 0
        %1274 = vmatpush1.bf16.msra.mxu0 0
        %1275 = vmatprep.subr.bf16.mxu0 0
        %1276 = vmatpush1.bf16.msra.mxu0 0
        %1277 = vmatprep.subr.bf16.mxu0 0
        %1278 = vmatpush1.bf16.msra.mxu0 0
        %1279 = vmatprep.subr.bf16.mxu0 0
        %1280 = vmatpush1.bf16.msra.mxu0 %v1260
        %1281 = vmatprep.subr.bf16.mxu0 0
        %1282 = vmatpush2.bf16.msra.mxu0 0
        %1283 = vmatprep.subr.bf16.mxu0 0
        %1284 = vmatpush2.bf16.msra.mxu0 0
        %1285 = vmatprep.subr.bf16.mxu0 0
        %1286 = vmatpush2.bf16.msra.mxu0 0
        %1287 = vmatprep.subr.bf16.mxu0 0
        %1288 = vmatpush2.bf16.msra.mxu0 0
        %1289 = vmatprep.subr.bf16.mxu0 0
        %1290 = vmatpush2.bf16.msra.mxu0 0
        %1291 = vmatprep.subr.bf16.mxu0 0
        %1292 = vmatpush2.bf16.msra.mxu0 0
        %1293 = vmatprep.subr.bf16.mxu0 0
        %1294 = vmatpush2.bf16.msra.mxu0 0
        %1295 = vmatprep.subr.bf16.mxu0 0
        %1296 = vmatpush2.bf16.msra.mxu0 0
        %1297 = vmatprep.mubr.bf16.mxu0 0
        %1298 = vmatmul.mubr.bf16.gmra.mxu0 %v1263
        %v1299 = vpop.f32.mrf.mxu0
        %v1300 = vadd.f32 %v1251, %v1299
        %v1301 = vpop.f32.mrf.mxu0
        %v1302 = vpop.f32.mrf.mxu0
        %v1303 = vpop.f32.mrf.mxu0
        %1304 = vdwg.mxu0
        %v1305 = vpack.c.bf16 %v951, %v951
        %v1306 = vld [vmem:[%s3 + $0x10] sm:$0xf]
        %v1307 = vld [vmem:[%s3 + $0x14] sm:$0xf]
        %v1310 = vunpack.c.l.b16 %v1306
        %v1311 = vunpack.c.l.b16 %v1307
        %v1312 = vpack.c.b16 %v1311, %v1310
        %v1315 = vsel %vm309, %v1305, 0
        %1317 = vmatprep.subr.bf16.mxu0 0
        %1318 = vmatpush1.bf16.msra.mxu0 0
        %1319 = vmatprep.subr.bf16.mxu0 0
        %1320 = vmatpush1.bf16.msra.mxu0 0
        %1321 = vmatprep.subr.bf16.mxu0 0
        %1322 = vmatpush1.bf16.msra.mxu0 0
        %1323 = vmatprep.subr.bf16.mxu0 0
        %1324 = vmatpush1.bf16.msra.mxu0 0
        %1325 = vmatprep.subr.bf16.mxu0 0
        %1326 = vmatpush1.bf16.msra.mxu0 0
        %1327 = vmatprep.subr.bf16.mxu0 0
        %1328 = vmatpush1.bf16.msra.mxu0 0
        %1329 = vmatprep.subr.bf16.mxu0 0
        %1330 = vmatpush1.bf16.msra.mxu0 0
        %1331 = vmatprep.subr.bf16.mxu0 0
        %1332 = vmatpush1.bf16.msra.mxu0 %v1312
        %1333 = vmatprep.subr.bf16.mxu0 0
        %1334 = vmatpush2.bf16.msra.mxu0 0
        %1335 = vmatprep.subr.bf16.mxu0 0
        %1336 = vmatpush2.bf16.msra.mxu0 0
        %1337 = vmatprep.subr.bf16.mxu0 0
        %1338 = vmatpush2.bf16.msra.mxu0 0
        %1339 = vmatprep.subr.bf16.mxu0 0
        %1340 = vmatpush2.bf16.msra.mxu0 0
        %1341 = vmatprep.subr.bf16.mxu0 0
        %1342 = vmatpush2.bf16.msra.mxu0 0
        %1343 = vmatprep.subr.bf16.mxu0 0
        %1344 = vmatpush2.bf16.msra.mxu0 0
        %1345 = vmatprep.subr.bf16.mxu0 0
        %1346 = vmatpush2.bf16.msra.mxu0 0
        %1347 = vmatprep.subr.bf16.mxu0 0
        %1348 = vmatpush2.bf16.msra.mxu0 0
        %1349 = vmatprep.mubr.bf16.mxu0 0
        %1350 = vmatmul.mubr.bf16.gmra.mxu0 %v1315
        %v1351 = vpop.f32.mrf.mxu0
        %v1352 = vadd.f32 0.0, %v1351
        %v1353 = vpop.f32.mrf.mxu0
        %v1354 = vpop.f32.mrf.mxu0
        %v1355 = vpop.f32.mrf.mxu0
        %1356 = vdwg.mxu0
        %v1357 = vadd.f32 %v1300, %v1352
        %v1358 = vpack.c.bf16 %v1000, %v1000
        %v1359 = vld [vmem:[%s3 + $0x18] sm:$0xf]
        %v1360 = vld [vmem:[%s3 + $0x1c] sm:$0xf]
        %v1363 = vunpack.c.l.b16 %v1359
        %v1364 = vunpack.c.l.b16 %v1360
        %v1365 = vpack.c.b16 %v1364, %v1363
        %v1368 = vsel %vm309, %v1358, 0
        %1370 = vmatprep.subr.bf16.mxu0 0
        %1371 = vmatpush1.bf16.msra.mxu0 0
        %1372 = vmatprep.subr.bf16.mxu0 0
        %1373 = vmatpush1.bf16.msra.mxu0 0
        %1374 = vmatprep.subr.bf16.mxu0 0
        %1375 = vmatpush1.bf16.msra.mxu0 0
        %1376 = vmatprep.subr.bf16.mxu0 0
        %1377 = vmatpush1.bf16.msra.mxu0 0
        %1378 = vmatprep.subr.bf16.mxu0 0
        %1379 = vmatpush1.bf16.msra.mxu0 0
        %1380 = vmatprep.subr.bf16.mxu0 0
        %1381 = vmatpush1.bf16.msra.mxu0 0
        %1382 = vmatprep.subr.bf16.mxu0 0
        %1383 = vmatpush1.bf16.msra.mxu0 0
        %1384 = vmatprep.subr.bf16.mxu0 0
        %1385 = vmatpush1.bf16.msra.mxu0 %v1365
        %1386 = vmatprep.subr.bf16.mxu0 0
        %1387 = vmatpush2.bf16.msra.mxu0 0
        %1388 = vmatprep.subr.bf16.mxu0 0
        %1389 = vmatpush2.bf16.msra.mxu0 0
        %1390 = vmatprep.subr.bf16.mxu0 0
        %1391 = vmatpush2.bf16.msra.mxu0 0
        %1392 = vmatprep.subr.bf16.mxu0 0
        %1393 = vmatpush2.bf16.msra.mxu0 0
        %1394 = vmatprep.subr.bf16.mxu0 0
        %1395 = vmatpush2.bf16.msra.mxu0 0
        %1396 = vmatprep.subr.bf16.mxu0 0
        %1397 = vmatpush2.bf16.msra.mxu0 0
        %1398 = vmatprep.subr.bf16.mxu0 0
        %1399 = vmatpush2.bf16.msra.mxu0 0
        %1400 = vmatprep.subr.bf16.mxu0 0
        %1401 = vmatpush2.bf16.msra.mxu0 0
        %1402 = vmatprep.mubr.bf16.mxu0 0
        %1403 = vmatmul.mubr.bf16.gmra.mxu0 %v1368
        %v1404 = vpop.f32.mrf.mxu0
        %v1405 = vadd.f32 0.0, %v1404
        %v1406 = vpop.f32.mrf.mxu0
        %v1407 = vpop.f32.mrf.mxu0
        %v1408 = vpop.f32.mrf.mxu0
        %1409 = vdwg.mxu0
        %v1410 = vadd.f32 %v1357, %v1405
        %v1411 = vpack.c.bf16 %v1049, %v1049
        %v1412 = vld [vmem:[%s3 + $0x20] sm:$0xf]
        %v1413 = vld [vmem:[%s3 + $0x24] sm:$0xf]
        %v1416 = vunpack.c.l.b16 %v1412
        %v1417 = vunpack.c.l.b16 %v1413
        %v1418 = vpack.c.b16 %v1417, %v1416
        %v1421 = vsel %vm309, %v1411, 0
        %1423 = vmatprep.subr.bf16.mxu0 0
        %1424 = vmatpush1.bf16.msra.mxu0 0
        %1425 = vmatprep.subr.bf16.mxu0 0
        %1426 = vmatpush1.bf16.msra.mxu0 0
        %1427 = vmatprep.subr.bf16.mxu0 0
        %1428 = vmatpush1.bf16.msra.mxu0 0
        %1429 = vmatprep.subr.bf16.mxu0 0
        %1430 = vmatpush1.bf16.msra.mxu0 0
        %1431 = vmatprep.subr.bf16.mxu0 0
        %1432 = vmatpush1.bf16.msra.mxu0 0
        %1433 = vmatprep.subr.bf16.mxu0 0
        %1434 = vmatpush1.bf16.msra.mxu0 0
        %1435 = vmatprep.subr.bf16.mxu0 0
        %1436 = vmatpush1.bf16.msra.mxu0 0
        %1437 = vmatprep.subr.bf16.mxu0 0
        %1438 = vmatpush1.bf16.msra.mxu0 %v1418
        %1439 = vmatprep.subr.bf16.mxu0 0
        %1440 = vmatpush2.bf16.msra.mxu0 0
        %1441 = vmatprep.subr.bf16.mxu0 0
        %1442 = vmatpush2.bf16.msra.mxu0 0
        %1443 = vmatprep.subr.bf16.mxu0 0
        %1444 = vmatpush2.bf16.msra.mxu0 0
        %1445 = vmatprep.subr.bf16.mxu0 0
        %1446 = vmatpush2.bf16.msra.mxu0 0
        %1447 = vmatprep.subr.bf16.mxu0 0
        %1448 = vmatpush2.bf16.msra.mxu0 0
        %1449 = vmatprep.subr.bf16.mxu0 0
        %1450 = vmatpush2.bf16.msra.mxu0 0
        %1451 = vmatprep.subr.bf16.mxu0 0
        %1452 = vmatpush2.bf16.msra.mxu0 0
        %1453 = vmatprep.subr.bf16.mxu0 0
        %1454 = vmatpush2.bf16.msra.mxu0 0
        %1455 = vmatprep.mubr.bf16.mxu0 0
        %1456 = vmatmul.mubr.bf16.gmra.mxu0 %v1421
        %v1457 = vpop.f32.mrf.mxu0
        %v1458 = vadd.f32 0.0, %v1457
        %v1459 = vpop.f32.mrf.mxu0
        %v1460 = vpop.f32.mrf.mxu0
        %v1461 = vpop.f32.mrf.mxu0
        %1462 = vdwg.mxu0
        %v1463 = vadd.f32 %v1410, %v1458
        %v1464 = vpack.c.bf16 %v1098, %v1098
        %v1465 = vld [vmem:[%s3 + $0x28] sm:$0xf]
        %v1466 = vld [vmem:[%s3 + $0x2c] sm:$0xf]
        %v1469 = vunpack.c.l.b16 %v1465
        %v1470 = vunpack.c.l.b16 %v1466
        %v1471 = vpack.c.b16 %v1470, %v1469
        %v1474 = vsel %vm309, %v1464, 0
        %1476 = vmatprep.subr.bf16.mxu0 0
        %1477 = vmatpush1.bf16.msra.mxu0 0
        %1478 = vmatprep.subr.bf16.mxu0 0
        %1479 = vmatpush1.bf16.msra.mxu0 0
        %1480 = vmatprep.subr.bf16.mxu0 0
        %1481 = vmatpush1.bf16.msra.mxu0 0
        %1482 = vmatprep.subr.bf16.mxu0 0
        %1483 = vmatpush1.bf16.msra.mxu0 0
        %1484 = vmatprep.subr.bf16.mxu0 0
        %1485 = vmatpush1.bf16.msra.mxu0 0
        %1486 = vmatprep.subr.bf16.mxu0 0
        %1487 = vmatpush1.bf16.msra.mxu0 0
        %1488 = vmatprep.subr.bf16.mxu0 0
        %1489 = vmatpush1.bf16.msra.mxu0 0
        %1490 = vmatprep.subr.bf16.mxu0 0
        %1491 = vmatpush1.bf16.msra.mxu0 %v1471
        %1492 = vmatprep.subr.bf16.mxu0 0
        %1493 = vmatpush2.bf16.msra.mxu0 0
        %1494 = vmatprep.subr.bf16.mxu0 0
        %1495 = vmatpush2.bf16.msra.mxu0 0
        %1496 = vmatprep.subr.bf16.mxu0 0
        %1497 = vmatpush2.bf16.msra.mxu0 0
        %1498 = vmatprep.subr.bf16.mxu0 0
        %1499 = vmatpush2.bf16.msra.mxu0 0
        %1500 = vmatprep.subr.bf16.mxu0 0
        %1501 = vmatpush2.bf16.msra.mxu0 0
        %1502 = vmatprep.subr.bf16.mxu0 0
        %1503 = vmatpush2.bf16.msra.mxu0 0
        %1504 = vmatprep.subr.bf16.mxu0 0
        %1505 = vmatpush2.bf16.msra.mxu0 0
        %1506 = vmatprep.subr.bf16.mxu0 0
        %1507 = vmatpush2.bf16.msra.mxu0 0
        %1508 = vmatprep.mubr.bf16.mxu0 0
        %1509 = vmatmul.mubr.bf16.gmra.mxu0 %v1474
        %v1510 = vpop.f32.mrf.mxu0
        %v1511 = vadd.f32 0.0, %v1510
        %v1512 = vpop.f32.mrf.mxu0
        %v1513 = vpop.f32.mrf.mxu0
        %v1514 = vpop.f32.mrf.mxu0
        %1515 = vdwg.mxu0
        %v1516 = vadd.f32 %v1463, %v1511
        %v1517 = vpack.c.bf16 %v1147, %v1147
        %v1518 = vld [vmem:[%s3 + $0x30] sm:$0xf]
        %v1519 = vld [vmem:[%s3 + $0x34] sm:$0xf]
        %v1522 = vunpack.c.l.b16 %v1518
        %v1523 = vunpack.c.l.b16 %v1519
        %v1524 = vpack.c.b16 %v1523, %v1522
        %v1527 = vsel %vm309, %v1517, 0
        %1529 = vmatprep.subr.bf16.mxu0 0
        %1530 = vmatpush1.bf16.msra.mxu0 0
        %1531 = vmatprep.subr.bf16.mxu0 0
        %1532 = vmatpush1.bf16.msra.mxu0 0
        %1533 = vmatprep.subr.bf16.mxu0 0
        %1534 = vmatpush1.bf16.msra.mxu0 0
        %1535 = vmatprep.subr.bf16.mxu0 0
        %1536 = vmatpush1.bf16.msra.mxu0 0
        %1537 = vmatprep.subr.bf16.mxu0 0
        %1538 = vmatpush1.bf16.msra.mxu0 0
        %1539 = vmatprep.subr.bf16.mxu0 0
        %1540 = vmatpush1.bf16.msra.mxu0 0
        %1541 = vmatprep.subr.bf16.mxu0 0
        %1542 = vmatpush1.bf16.msra.mxu0 0
        %1543 = vmatprep.subr.bf16.mxu0 0
        %1544 = vmatpush1.bf16.msra.mxu0 %v1524
        %1545 = vmatprep.subr.bf16.mxu0 0
        %1546 = vmatpush2.bf16.msra.mxu0 0
        %1547 = vmatprep.subr.bf16.mxu0 0
        %1548 = vmatpush2.bf16.msra.mxu0 0
        %1549 = vmatprep.subr.bf16.mxu0 0
        %1550 = vmatpush2.bf16.msra.mxu0 0
        %1551 = vmatprep.subr.bf16.mxu0 0
        %1552 = vmatpush2.bf16.msra.mxu0 0
        %1553 = vmatprep.subr.bf16.mxu0 0
        %1554 = vmatpush2.bf16.msra.mxu0 0
        %1555 = vmatprep.subr.bf16.mxu0 0
        %1556 = vmatpush2.bf16.msra.mxu0 0
        %1557 = vmatprep.subr.bf16.mxu0 0
        %1558 = vmatpush2.bf16.msra.mxu0 0
        %1559 = vmatprep.subr.bf16.mxu0 0
        %1560 = vmatpush2.bf16.msra.mxu0 0
        %1561 = vmatprep.mubr.bf16.mxu0 0
        %1562 = vmatmul.mubr.bf16.gmra.mxu0 %v1527
        %v1563 = vpop.f32.mrf.mxu0
        %v1564 = vadd.f32 0.0, %v1563
        %v1565 = vpop.f32.mrf.mxu0
        %v1566 = vpop.f32.mrf.mxu0
        %v1567 = vpop.f32.mrf.mxu0
        %1568 = vdwg.mxu0
        %v1569 = vadd.f32 %v1516, %v1564
        %v1570 = vpack.c.bf16 %v1196, %v1196
        %v1571 = vld [vmem:[%s3 + $0x38] sm:$0xf]
        %v1572 = vld [vmem:[%s3 + $0x3c] sm:$0xf]
        %v1575 = vunpack.c.l.b16 %v1571
        %v1576 = vunpack.c.l.b16 %v1572
        %v1577 = vpack.c.b16 %v1576, %v1575
        %v1580 = vsel %vm309, %v1570, 0
        %1582 = vmatprep.subr.bf16.mxu0 0
        %1583 = vmatpush1.bf16.msra.mxu0 0
        %1584 = vmatprep.subr.bf16.mxu0 0
        %1585 = vmatpush1.bf16.msra.mxu0 0
        %1586 = vmatprep.subr.bf16.mxu0 0
        %1587 = vmatpush1.bf16.msra.mxu0 0
        %1588 = vmatprep.subr.bf16.mxu0 0
        %1589 = vmatpush1.bf16.msra.mxu0 0
        %1590 = vmatprep.subr.bf16.mxu0 0
        %1591 = vmatpush1.bf16.msra.mxu0 0
        %1592 = vmatprep.subr.bf16.mxu0 0
        %1593 = vmatpush1.bf16.msra.mxu0 0
        %1594 = vmatprep.subr.bf16.mxu0 0
        %1595 = vmatpush1.bf16.msra.mxu0 0
        %1596 = vmatprep.subr.bf16.mxu0 0
        %1597 = vmatpush1.bf16.msra.mxu0 %v1577
        %1598 = vmatprep.subr.bf16.mxu0 0
        %1599 = vmatpush2.bf16.msra.mxu0 0
        %1600 = vmatprep.subr.bf16.mxu0 0
        %1601 = vmatpush2.bf16.msra.mxu0 0
        %1602 = vmatprep.subr.bf16.mxu0 0
        %1603 = vmatpush2.bf16.msra.mxu0 0
        %1604 = vmatprep.subr.bf16.mxu0 0
        %1605 = vmatpush2.bf16.msra.mxu0 0
        %1606 = vmatprep.subr.bf16.mxu0 0
        %1607 = vmatpush2.bf16.msra.mxu0 0
        %1608 = vmatprep.subr.bf16.mxu0 0
        %1609 = vmatpush2.bf16.msra.mxu0 0
        %1610 = vmatprep.subr.bf16.mxu0 0
        %1611 = vmatpush2.bf16.msra.mxu0 0
        %1612 = vmatprep.subr.bf16.mxu0 0
        %1613 = vmatpush2.bf16.msra.mxu0 0
        %1614 = vmatprep.mubr.bf16.mxu0 0
        %1615 = vmatmul.mubr.bf16.gmra.mxu0 %v1580
        %v1616 = vpop.f32.mrf.mxu0
        %v1617 = vadd.f32 0.0, %v1616
        %v1618 = vpop.f32.mrf.mxu0
        %v1619 = vpop.f32.mrf.mxu0
        %v1620 = vpop.f32.mrf.mxu0
        %1621 = vdwg.mxu0
        %v1622 = vadd.f32 %v1569, %v1617
        %v1623 = vld [vmem:[%s4] sm:$0x1]
        %v1625 = vlaneseq
        %v1626 = vshrl.u32 %v1625, 7
        %v1627 = vsub.s32 0, %v1626
        %v1628 = vrot.slane %v1623, %v1627
        %v1630 = vadd.f32 %v1622, %v1628
        %1631 = vst [vmem:[%s247] sm:$0xff] %v1630
        %s1632 = sand.u32 %s147, 1
        %s1633 = scalar_lea.sflag [#allocation3], %s1632
        %s1634 = sand.u32 %s147, 1
        %s1635 = smul.addr %s1634, 8
        %s1636 = scalar_lea.vmem [#allocation2], %s1635
        // Predicated region
        $region41: #{attention_pallas.3} parent=39 // pred_check
          %p1637 = pneg %p157
        $region42: #{attention_pallas.3} parent=39 // pred_check_branch
          %1639 = sbr.rel (%p1637) target = $region44
        $region43: #{attention_pallas.3} parent=39 // pred_region
          %s1641 = ssub.s32 128, 128
          %1642 = vsyncadd %s1633, %s1641
          %s1643 = smul.addr %s19, 128
          %s1644 = scalar_lea.hbm %s5, %s1643
          %s1646 = sshll.u32 %s1636, 4
          %s1647 = int_to_ptr.vmem [resolvable:$true] %s1646
          %1649 = dma.vmem_to_hbm [thread:$0]  %s1647, 128, %s1644, %s1633
        $region44: #{attention_pallas.3} parent=39 // pred_fallthru
          _
      $region40: #{attention_pallas.3} parent=5 // pred_fallthru
        _
      %p1650 = scmp.le.s32.totalorder 2, %s14
      // Predicated region
      $region45: #{attention_pallas.3} parent=5 // pred_check
        %p1651 = pneg %p1650
      $region46: #{attention_pallas.3} parent=5 // pred_check_branch
        %1653 = sbr.rel (%p1651) target = $region48
      $region47: #{attention_pallas.3} parent=5 // pred_region
        %s1654 = ssub.s32 %s14, 2
        // Predicated region
        $region49: #{attention_pallas.3} parent=47 // pred_check
          %p1655 = pneg %p163
        $region50: #{attention_pallas.3} parent=47 // pred_check_branch
          %1657 = sbr.rel (%p1655) target = $region52
        $region51: #{attention_pallas.3} parent=47 // pred_region
          %s1658 = sand.u32 %s148, 1
          %s1659 = scalar_lea.sflag [#allocation3], %s1658
          %s1660 = sand.u32 %s148, 1
          %s1661 = smul.addr %s1660, 8
          %s1662 = scalar_lea.vmem [#allocation2], %s1661
          %1663 = dma.done %s1659, 128
        $region52: #{attention_pallas.3} parent=47 // pred_fallthru
          _
      $region48: #{attention_pallas.3} parent=5 // pred_fallthru
        _
    $region6: #{attention_pallas.3} parent=1 // loop_footer
      %s18 = sadd.s32 1, %s14
    $region7: #{attention_pallas.3} parent=1 // loop_footer_branch
      %13 = sbr.rel target = $region3
    $region8: #{attention_pallas.3} parent=1 // loop_exit
      _
    %1664 = vsyncpa [#allocation3], 1
    %s1665 = scalar_lea.sflag [#allocation3], 1
    %1666 = vsyncpa %s1665, 1

</llo_original>
